<compile_context>
chip_gen: v6e
topology: v6e:2x2x1
jax: 0.10.0
libtpu: 0.0.40
codegen_flags: <defaults>
</compile_context>

<pallas_src>
import functools
import math

import jax
import jax.numpy as jnp
from jax import lax
from jax.experimental import pallas as pl
from jax.experimental.pallas import tpu as pltpu

EPSILON = 1e-8
_PAD_BIAS = -1e30  # additive logit bias for padded columns (finite, exp() == 0)


def _round_up(x, m):
    return ((x + m - 1) // m) * m


def _vmem_capacity_bytes():
    try:
        return int(pltpu.get_tpu_info().vmem_capacity_bytes)
    except Exception:
        return 64 * 1024 * 1024  # conservative (v7x-sized) fallback


def _cmpm_kernel(img_ref, txt_ref, lab_tile_ref, lab_row_ref, log_invc_ref,
                 inv_img_tile_ref, inv_img_row_ref, inv_txt_row_ref, bias_ref,
                 sim_ref, loss_rows_ref, *, log_eps):
    """One row-tile of the CMPM forward pass.

    img_ref / txt_ref : (B, D) matmul-dtype, full arrays (resident, single-buffered)
    lab_tile_ref      : (tB, 1) int32 labels of this row tile
    lab_row_ref       : (1, B)  int32 all labels (padded entries are -1)
    log_invc_ref      : (1, B)  f32 log(1/counts + eps)
    inv_img_tile_ref  : (tB, 1) f32 inverse image norms of this row tile
    inv_img_row_ref   : (1, B)  f32 inverse image norms (all rows)
    inv_txt_row_ref   : (1, B)  f32 inverse text norms (all rows)
    bias_ref          : (1, B)  f32 additive logit bias (0 real, -1e30 padded cols)
    sim_ref           : (tB, B) cosine-similarity output tile
    loss_rows_ref     : (tB, 1) f32 per-row (i2t + t2i) KL contributions
    """
    i = pl.program_id(0)
    tB = sim_ref.shape[0]
    r0 = pl.multiple_of(i * tB, tB)

    # Label-equality mask for this tile rebuilt in-kernel (no BxB HBM input);
    # log-mask via a select against the precomputed [1,B] log(1/counts + eps)
    # row -> no (tB, B) log on the EUP (which already carries the softmax exps).
    lab_t = lab_tile_ref[...]                                   # (tB, 1)
    lab_r = lab_row_ref[...]                                    # (1, B)
    log_mask = jnp.where(lab_t == lab_r, log_invc_ref[...], log_eps)   # (tB, B)
    bias = bias_ref[...]                                        # (1, B)

    def kl_rows(logits):
        # Fused:  sum_j softmax_j * (log_softmax_j - log_mask_j)
        #       = (1/s) * sum_j e_j * (shifted_j - log_mask_j) - log(s)
        m = jnp.max(logits, axis=1, keepdims=True)              # (tB, 1)
        sh = logits - m
        e = jnp.exp(sh)
        s = jnp.sum(e, axis=1, keepdims=True)                   # (tB, 1), s >= 1
        t = jnp.sum(e * (sh - log_mask), axis=1, keepdims=True)
        return t * pl.reciprocal(s, approx=True) - jnp.log(s)

    # Contract the last dims of both operands -> MXU consumes the "transposed"
    # RHS natively; no [D, B] transpose materialized in VMEM.
    dn = (((1,), (1,)), ((), ()))

    # ---- i2t branch: compute and fully consume before the t2i matmul --------
    img_tile = img_ref[pl.ds(r0, tB), :]                        # (tB, D)
    raw_i2t = lax.dot_general(img_tile, txt_ref[...], dn,
                              preferred_element_type=jnp.float32)       # (tB, B)
    # image_proj_text rows: column-rescale by the text inverse norms.
    logits_i2t = raw_i2t * inv_txt_row_ref[...]
    # Cosine-sim tile is a further row-rescale (no third matmul).
    sim_ref[...] = (logits_i2t * inv_img_tile_ref[...]).astype(sim_ref.dtype)
    loss_i2t = kl_rows(logits_i2t + bias)                       # (tB, 1)

    # ---- t2i branch ----------------------------------------------------------
    txt_tile = txt_ref[pl.ds(r0, tB), :]                        # (tB, D)
    raw_t2i = lax.dot_general(txt_tile, img_ref[...], dn,
                              preferred_element_type=jnp.float32)       # (tB, B)
    logits_t2i = raw_t2i * inv_img_row_ref[...] + bias
    loss_rows_ref[...] = loss_i2t + kl_rows(logits_t2i)


def cmpm_pallas(image_embeddings, text_embeddings, labels, *,
                matmul_dtype=jnp.bfloat16, sim_dtype=jnp.float32, epsilon=EPSILON):
    """Returns (cmpm_loss, sim_cos [B, B] f32).

    matmul_dtype=jnp.bfloat16 (default) uses bf16 MXU operands with f32
    accumulation; pass jnp.float32 for a bit-closer match to the reference.
    """
    B, D = image_embeddings.shape
    img32 = image_embeddings.astype(jnp.float32)
    txt32 = text_embeddings.astype(jnp.float32)
    labels = labels.astype(jnp.int32).reshape(B)

    # ---- grid-invariant precompute (hoisted out of the kernel) --------------
    inv_img = lax.rsqrt(jnp.sum(img32 * img32, axis=1))         # (B,)
    inv_txt = lax.rsqrt(jnp.sum(txt32 * txt32, axis=1))         # (B,)
    eq = (labels[:, None] == labels[None, :]).astype(jnp.float32)
    counts = jnp.sum(eq, axis=0)                                # (B,), symmetric mask
    log_inv_counts = jnp.log(1.0 / counts + epsilon)            # (B,)
    log_eps = float(math.log(epsilon))

    # ---- pad to (128, 128)-aligned shapes ------------------------------------
    B_pad = max(_round_up(B, 128), 128)
    D_pad = max(_round_up(D, 128), 128)
    pad_r, pad_c = B_pad - B, D_pad - D

    img_mm = jnp.pad(img32, ((0, pad_r), (0, pad_c))).astype(matmul_dtype)
    txt_mm = jnp.pad(txt32, ((0, pad_r), (0, pad_c))).astype(matmul_dtype)
    lab_col = jnp.pad(labels, (0, pad_r), constant_values=-1).reshape(B_pad, 1)
    lab_row = lab_col.reshape(1, B_pad)
    inv_img_col = jnp.pad(inv_img, (0, pad_r)).reshape(B_pad, 1)
    inv_img_row = inv_img_col.reshape(1, B_pad)
    inv_txt_row = jnp.pad(inv_txt, (0, pad_r)).reshape(1, B_pad)
    log_invc_row = jnp.pad(log_inv_counts, (0, pad_r),
                           constant_values=log_eps).reshape(1, B_pad)
    col_bias = jnp.where(jnp.arange(B_pad) < B, 0.0,
                         _PAD_BIAS).astype(jnp.float32).reshape(1, B_pad)

    # ---- tile size & VMEM budget ---------------------------------------------
    vmem_cap = _vmem_capacity_bytes()
    mm_bytes = jnp.dtype(matmul_dtype).itemsize
    sim_bytes = jnp.dtype(sim_dtype).itemsize

    def live_bytes(tB):
        resident = 2 * B_pad * D_pad * mm_bytes + 8 * B_pad * 4
        per_step = tB * B_pad * (4 * 4 + 2 * sim_bytes) + 8 * tB * 4
        return resident + per_step

    tB = 256 if (B_pad % 256 == 0 and live_bytes(256) <= vmem_cap // 2) else 128
    grid = (B_pad // tB,)

    vmem_high = min(int(0.875 * vmem_cap), 100 * 1024 * 1024)
    vmem_limit = int(min(max(2 * live_bytes(tB), 32 * 1024 * 1024), vmem_high))

    kernel = functools.partial(_cmpm_kernel, log_eps=log_eps)

    def _build(single_buffer_residents):
        if single_buffer_residents:
            def resident(shape):
                return pl.BlockSpec(shape, lambda i: (0, 0),
                                    pipeline_mode=pl.Buffered(1))
        else:
            def resident(shape):
                return pl.BlockSpec(shape, lambda i: (0, 0))
        in_specs = [
            resident((B_pad, D_pad)),                   # image embeddings (resident)
            resident((B_pad, D_pad)),                   # text embeddings  (resident)
            pl.BlockSpec((tB, 1), lambda i: (i, 0)),    # labels, row tile
            resident((1, B_pad)),                       # labels, full row
            resident((1, B_pad)),                       # log(1/counts + eps)
            pl.BlockSpec((tB, 1), lambda i: (i, 0)),    # inv image norms, row tile
            resident((1, B_pad)),                       # inv image norms, full row
            resident((1, B_pad)),                       # inv text norms, full row
            resident((1, B_pad)),                       # padded-column logit bias
        ]
        return pl.pallas_call(
            kernel,
            out_shape=(
                jax.ShapeDtypeStruct((B_pad, B_pad), sim_dtype),
                jax.ShapeDtypeStruct((B_pad, 1), jnp.float32),
            ),
            grid=grid,
            in_specs=in_specs,
            out_specs=(
                pl.BlockSpec((tB, B_pad), lambda i: (i, 0)),   # lane-dense sim tile
                pl.BlockSpec((tB, 1), lambda i: (i, 0)),       # per-row loss
            ),
            compiler_params=pltpu.CompilerParams(
                dimension_semantics=("parallel",),
                vmem_limit_bytes=vmem_limit,
            ),
        )

    args = (img_mm, txt_mm, lab_col, lab_row, log_invc_row,
            inv_img_col, inv_img_row, inv_txt_row, col_bias)
    try:
        sim_p, loss_rows = _build(True)(*args)
    except Exception:
        # Fallback if this jax build rejects pipeline_mode=pl.Buffered(1).
        sim_p, loss_rows = _build(False)(*args)

    sim = sim_p[:B, :B].astype(jnp.float32)
    # i2t.sum(1).mean() + t2i.sum(1).mean() == mean over real rows of (i2t + t2i).
    cmpm_loss = jnp.mean(loss_rows[:B, 0])
    return cmpm_loss, sim


def _cmpm_reference(image_embeddings, text_embeddings, labels, epsilon=EPSILON):
    """Pure-JAX f32 reference mirroring the PyTorch compute_cmpm_loss."""
    img = image_embeddings.astype(jnp.float32)
    txt = text_embeddings.astype(jnp.float32)
    labels = labels.reshape(-1)
    mask = (labels[:, None] == labels[None, :]).astype(jnp.float32)
    image_norm = img / jnp.linalg.norm(img, axis=1, keepdims=True)
    text_norm = txt / jnp.linalg.norm(txt, axis=1, keepdims=True)
    image_proj_text = img @ text_norm.T
    text_proj_image = txt @ image_norm.T
    mask_norm = mask / jnp.sum(mask, axis=1)   # broadcasts over last dim (as in torch)
    i2t = jax.nn.softmax(image_proj_text, axis=1) * (
        jax.nn.log_softmax(image_proj_text, axis=1) - jnp.log(mask_norm + epsilon))
    t2i = jax.nn.softmax(text_proj_image, axis=1) * (
        jax.nn.log_softmax(text_proj_image, axis=1) - jnp.log(mask_norm + epsilon))
    loss = jnp.sum(i2t, axis=1).mean() + jnp.sum(t2i, axis=1).mean()
    sim = image_norm @ text_norm.T
    return loss, sim


class CMPMLoss:
    """JAX/Pallas port of the PyTorch CMPMLoss module (CMPM branch)."""

    def __init__(self, feature_size, num_classes, CMPM=True, CMPC=False,
                 epsilon=EPSILON, key=None):
        self.CMPM = CMPM
        self.CMPC = CMPC
        self.epsilon = epsilon
        self.num_classes = num_classes
        self.feature_size = feature_size
        if key is None:
            key = jax.random.PRNGKey(0)
        # Deterministic Xavier-uniform init of W: shape (feature_size, num_classes).
        limit = (6.0 / (feature_size + num_classes)) ** 0.5
        self.W = jax.random.uniform(
            key, (feature_size, num_classes),
            minval=-limit, maxval=limit, dtype=jnp.float32)

    def __call__(self, image_embeddings, text_embeddings, labels):
        # NOTE: the reference module initializes 'position_similarity' but writes
        # 'positive_similarity'; both keys are kept to mirror that behavior.
        result = {m: 0.0 for m in ['loss', 'cmpm', 'cmpc', 'image_precision',
                                   'text_precision', 'negative_similarity',
                                   'position_similarity']}
        if self.CMPM:
            labels = labels.astype(jnp.int32)
            cmpm_loss, sim_cos = cmpm_pallas(image_embeddings, text_embeddings,
                                             labels, epsilon=self.epsilon)

            # torch.masked_select has a data-dependent output shape, so it stays
            # as eager boolean indexing outside jit / the kernel.
            labels_mask = labels[:, None] == labels[None, :]
            pos_sim = sim_cos[labels_mask]
            neg_sim = sim_cos[~labels_mask]

            result['cmpm'] = cmpm_loss
            result['positive_similarity'] = pos_sim
            result['negative_similarity'] = neg_sim
        if self.CMPC:
            # TODO(synk): CMPC branch is disabled by default in the reference module; not implemented.
            pass
        result['loss'] = result['cmpm'] + result['cmpc']
        return result


if __name__ == "__main__":
    key = jax.random.PRNGKey(0)
    k_img, k_txt, k_lab, k_w = jax.random.split(key, 4)

    B, D, num_classes = 8, 32, 10
    image_embeddings = jax.random.normal(k_img, (B, D), dtype=jnp.float32)
    text_embeddings = jax.random.normal(k_txt, (B, D), dtype=jnp.float32)
    labels = jax.random.randint(k_lab, (B,), 0, 4, dtype=jnp.int32)

    # Numerical sanity check of the kernel math on the f32 MXU path
    # (loose tolerance covers pl.reciprocal(approx=True) and rsqrt).
    ref_loss, ref_sim = _cmpm_reference(image_embeddings, text_embeddings, labels)
    chk_loss, chk_sim = cmpm_pallas(image_embeddings, text_embeddings, labels,
                                    matmul_dtype=jnp.float32)
    assert bool(jnp.allclose(chk_sim, ref_sim, rtol=1e-2, atol=1e-2))
    assert bool(jnp.allclose(chk_loss, ref_loss, rtol=1e-2, atol=1e-2))

    # Full module forward on the default (bf16 MXU) path.
    loss_mod = CMPMLoss(feature_size=D, num_classes=num_classes, key=k_w)
    result = loss_mod(image_embeddings, text_embeddings, labels)

    jax.block_until_ready(result['loss'])
    jax.block_until_ready(result['positive_similarity'])
    jax.block_until_ready(result['negative_similarity'])

    print("KERNEL_OK")
</pallas_src>

<mosaic_0001>
module attributes {stable_mosaic.version = 11 : i64} {
  func.func @_cmpm_kernel(%arg0: i32, %arg1: memref<128x128xf32, #tpu.memory_space<vmem>>, %arg2: memref<128x128xf32, #tpu.memory_space<vmem>>, %arg3: memref<128x1xi32, #tpu.memory_space<vmem>>, %arg4: memref<1x128xi32, #tpu.memory_space<vmem>>, %arg5: memref<1x128xf32, #tpu.memory_space<vmem>>, %arg6: memref<128x1xf32, #tpu.memory_space<vmem>>, %arg7: memref<1x128xf32, #tpu.memory_space<vmem>>, %arg8: memref<1x128xf32, #tpu.memory_space<vmem>>, %arg9: memref<1x128xf32, #tpu.memory_space<vmem>>, %arg10: memref<128x128xf32, #tpu.memory_space<vmem>>, %arg11: memref<128x1xf32, #tpu.memory_space<vmem>>) attributes {dimension_semantics = [#tpu.dimension_semantics<parallel>], iteration_bounds = array<i64: 1>, scalar_prefetch = 0 : i64, scratch_operands = 0 : i64, tpu.core_type = #tpu.core_type<tc>, window_params = [{pipeline_mode = #tpu.pipeline_mode<synchronous>, transform_indices = @transform_0, window_bounds = array<i64: 128, 128>}, {pipeline_mode = #tpu.pipeline_mode<synchronous>, transform_indices = @transform_1, window_bounds = array<i64: 128, 128>}, {transform_indices = @transform_2, window_bounds = array<i64: 128, 1>}, {pipeline_mode = #tpu.pipeline_mode<synchronous>, transform_indices = @transform_3, window_bounds = array<i64: 1, 128>}, {pipeline_mode = #tpu.pipeline_mode<synchronous>, transform_indices = @transform_4, window_bounds = array<i64: 1, 128>}, {transform_indices = @transform_5, window_bounds = array<i64: 128, 1>}, {pipeline_mode = #tpu.pipeline_mode<synchronous>, transform_indices = @transform_6, window_bounds = array<i64: 1, 128>}, {pipeline_mode = #tpu.pipeline_mode<synchronous>, transform_indices = @transform_7, window_bounds = array<i64: 1, 128>}, {pipeline_mode = #tpu.pipeline_mode<synchronous>, transform_indices = @transform_8, window_bounds = array<i64: 1, 128>}, {transform_indices = @transform_9, window_bounds = array<i64: 128, 128>}, {transform_indices = @transform_10, window_bounds = array<i64: 128, 1>}]} {
    %c128_i32 = arith.constant 128 : i32
    %0 = arith.muli %arg0, %c128_i32 : i32
    %1 = tpu.assume_multiple %0, 128 : i32
    %c0 = arith.constant 0 : index
    %c0_0 = arith.constant 0 : index
    %2 = vector.load %arg3[%c0, %c0_0] : memref<128x1xi32, #tpu.memory_space<vmem>>, vector<128x1xi32>
    %c0_1 = arith.constant 0 : index
    %c0_2 = arith.constant 0 : index
    %3 = vector.load %arg4[%c0_1, %c0_2] : memref<1x128xi32, #tpu.memory_space<vmem>>, vector<1x128xi32>
    %4 = vector.broadcast %2 : vector<128x1xi32> to vector<128x128xi32>
    %5 = vector.broadcast %3 : vector<1x128xi32> to vector<128x128xi32>
    %6 = arith.cmpi eq, %4, %5 : vector<128x128xi32>
    %c0_3 = arith.constant 0 : index
    %c0_4 = arith.constant 0 : index
    %7 = vector.load %arg5[%c0_3, %c0_4] : memref<1x128xf32, #tpu.memory_space<vmem>>, vector<1x128xf32>
    %cst = arith.constant -18.420681 : f32
    %8 = vector.shape_cast %7 : vector<1x128xf32> to vector<1x128xf32>
    %9 = vector.broadcast %8 : vector<1x128xf32> to vector<128x128xf32>
    %10 = vector.broadcast %cst : f32 to vector<128x128xf32>
    %11 = arith.select %6, %9, %10 : vector<128x128xi1>, vector<128x128xf32>
    %c0_5 = arith.constant 0 : index
    %c0_6 = arith.constant 0 : index
    %12 = vector.load %arg9[%c0_5, %c0_6] : memref<1x128xf32, #tpu.memory_space<vmem>>, vector<1x128xf32>
    %13 = arith.index_cast %1 : i32 to index
    %c0_7 = arith.constant 0 : index
    %14 = vector.load %arg1[%13, %c0_7] : memref<128x128xf32, #tpu.memory_space<vmem>>, vector<128x128xf32>
    %c0_8 = arith.constant 0 : index
    %c0_9 = arith.constant 0 : index
    %15 = vector.load %arg2[%c0_8, %c0_9] : memref<128x128xf32, #tpu.memory_space<vmem>>, vector<128x128xf32>
    %cst_10 = arith.constant dense<0.000000e+00> : vector<128x128xf32>
    %16 = tpu.matmul %14, %15, %cst_10 {dimension_numbers = #tpu.dot_dimension_numbers<[1], [1], [0], [0], [0, 0, 1, 0], [], []>} : vector<128x128xf32>, vector<128x128xf32>, vector<128x128xf32> -> vector<128x128xf32>
    %c0_11 = arith.constant 0 : index
    %c0_12 = arith.constant 0 : index
    %17 = vector.load %arg8[%c0_11, %c0_12] : memref<1x128xf32, #tpu.memory_space<vmem>>, vector<1x128xf32>
    %18 = vector.broadcast %17 : vector<1x128xf32> to vector<128x128xf32>
    %19 = arith.mulf %16, %18 : vector<128x128xf32>
    %c0_13 = arith.constant 0 : index
    %c0_14 = arith.constant 0 : index
    %20 = vector.load %arg6[%c0_13, %c0_14] : memref<128x1xf32, #tpu.memory_space<vmem>>, vector<128x1xf32>
    %21 = vector.broadcast %20 : vector<128x1xf32> to vector<128x128xf32>
    %22 = arith.mulf %19, %21 : vector<128x128xf32>
    %c0_15 = arith.constant 0 : index
    %c0_16 = arith.constant 0 : index
    %23 = vector.load %arg10[%c0_15, %c0_16] : memref<128x128xf32, #tpu.memory_space<vmem>>, vector<128x128xf32>
    tpu.vector_store %arg10[%c0_15, %c0_16], %22 {strides = array<i32>} : memref<128x128xf32, #tpu.memory_space<vmem>>, vector<128x128xf32>,
    %24 = vector.broadcast %12 : vector<1x128xf32> to vector<128x128xf32>
    %25 = arith.addf %19, %24 : vector<128x128xf32>
    %cst_17 = arith.constant dense<0xFF800000> : vector<128xf32>
    %26 = vector.multi_reduction <maximumf>, %25, %cst_17 [1] : vector<128x128xf32> to vector<128xf32>
    %27 = vector.shape_cast %26 : vector<128xf32> to vector<128x1xf32>
    %28 = vector.broadcast %27 : vector<128x1xf32> to vector<128x128xf32>
    %29 = arith.subf %25, %28 : vector<128x128xf32>
    %30 = math.exp %29 : vector<128x128xf32>
    %cst_18 = arith.constant dense<0.000000e+00> : vector<128xf32>
    %31 = vector.multi_reduction <add>, %30, %cst_18 [1] : vector<128x128xf32> to vector<128xf32>
    %32 = vector.shape_cast %31 : vector<128xf32> to vector<128x1xf32>
    %33 = arith.subf %29, %11 : vector<128x128xf32>
    %34 = arith.mulf %30, %33 : vector<128x128xf32>
    %cst_19 = arith.constant dense<0.000000e+00> : vector<128xf32>
    %35 = vector.multi_reduction <add>, %34, %cst_19 [1] : vector<128x128xf32> to vector<128xf32>
    %36 = vector.shape_cast %35 : vector<128xf32> to vector<128x1xf32>
    %37 = tpu.reciprocal %32 {approx = true} : vector<128x1xf32> -> vector<128x1xf32>
    %38 = arith.mulf %36, %37 : vector<128x1xf32>
    %39 = math.log %32 : vector<128x1xf32>
    %40 = arith.subf %38, %39 : vector<128x1xf32>
    %41 = arith.index_cast %1 : i32 to index
    %c0_20 = arith.constant 0 : index
    %42 = vector.load %arg2[%41, %c0_20] : memref<128x128xf32, #tpu.memory_space<vmem>>, vector<128x128xf32>
    %c0_21 = arith.constant 0 : index
    %c0_22 = arith.constant 0 : index
    %43 = vector.load %arg1[%c0_21, %c0_22] : memref<128x128xf32, #tpu.memory_space<vmem>>, vector<128x128xf32>
    %cst_23 = arith.constant dense<0.000000e+00> : vector<128x128xf32>
    %44 = tpu.matmul %42, %43, %cst_23 {dimension_numbers = #tpu.dot_dimension_numbers<[1], [1], [0], [0], [0, 0, 1, 0], [], []>} : vector<128x128xf32>, vector<128x128xf32>, vector<128x128xf32> -> vector<128x128xf32>
    %c0_24 = arith.constant 0 : index
    %c0_25 = arith.constant 0 : index
    %45 = vector.load %arg7[%c0_24, %c0_25] : memref<1x128xf32, #tpu.memory_space<vmem>>, vector<1x128xf32>
    %46 = vector.broadcast %45 : vector<1x128xf32> to vector<128x128xf32>
    %47 = arith.mulf %44, %46 : vector<128x128xf32>
    %48 = vector.broadcast %12 : vector<1x128xf32> to vector<128x128xf32>
    %49 = arith.addf %47, %48 : vector<128x128xf32>
    %cst_26 = arith.constant dense<0xFF800000> : vector<128xf32>
    %50 = vector.multi_reduction <maximumf>, %49, %cst_26 [1] : vector<128x128xf32> to vector<128xf32>
    %51 = vector.shape_cast %50 : vector<128xf32> to vector<128x1xf32>
    %52 = vector.broadcast %51 : vector<128x1xf32> to vector<128x128xf32>
    %53 = arith.subf %49, %52 : vector<128x128xf32>
    %54 = math.exp %53 : vector<128x128xf32>
    %cst_27 = arith.constant dense<0.000000e+00> : vector<128xf32>
    %55 = vector.multi_reduction <add>, %54, %cst_27 [1] : vector<128x128xf32> to vector<128xf32>
    %56 = vector.shape_cast %55 : vector<128xf32> to vector<128x1xf32>
    %57 = arith.subf %53, %11 : vector<128x128xf32>
    %58 = arith.mulf %54, %57 : vector<128x128xf32>
    %cst_28 = arith.constant dense<0.000000e+00> : vector<128xf32>
    %59 = vector.multi_reduction <add>, %58, %cst_28 [1] : vector<128x128xf32> to vector<128xf32>
    %60 = vector.shape_cast %59 : vector<128xf32> to vector<128x1xf32>
    %61 = tpu.reciprocal %56 {approx = true} : vector<128x1xf32> -> vector<128x1xf32>
    %62 = arith.mulf %60, %61 : vector<128x1xf32>
    %63 = math.log %56 : vector<128x1xf32>
    %64 = arith.subf %62, %63 : vector<128x1xf32>
    %65 = arith.addf %40, %64 : vector<128x1xf32>
    %c0_29 = arith.constant 0 : index
    %c0_30 = arith.constant 0 : index
    %66 = vector.load %arg11[%c0_29, %c0_30] : memref<128x1xf32, #tpu.memory_space<vmem>>, vector<128x1xf32>
    tpu.vector_store %arg11[%c0_29, %c0_30], %65 {strides = array<i32>} : memref<128x1xf32, #tpu.memory_space<vmem>>, vector<128x1xf32>,
    return
  }
  func.func @transform_0(%arg0: i32) -> (i32, i32) {
    %c0_i32 = arith.constant 0 : i32
    %c0_i32_0 = arith.constant 0 : i32
    %c0_i32_1 = arith.constant 0 : i32
    return %c0_i32, %c0_i32_0 : i32, i32
  }
  func.func @transform_1(%arg0: i32) -> (i32, i32) {
    %c0_i32 = arith.constant 0 : i32
    %c0_i32_0 = arith.constant 0 : i32
    %c0_i32_1 = arith.constant 0 : i32
    return %c0_i32, %c0_i32_0 : i32, i32
  }
  func.func @transform_2(%arg0: i32) -> (i32, i32) {
    %c0_i32 = arith.constant 0 : i32
    %c0_i32_0 = arith.constant 0 : i32
    return %arg0, %c0_i32 : i32, i32
  }
  func.func @transform_3(%arg0: i32) -> (i32, i32) {
    %c0_i32 = arith.constant 0 : i32
    %c0_i32_0 = arith.constant 0 : i32
    %c0_i32_1 = arith.constant 0 : i32
    return %c0_i32, %c0_i32_0 : i32, i32
  }
  func.func @transform_4(%arg0: i32) -> (i32, i32) {
    %c0_i32 = arith.constant 0 : i32
    %c0_i32_0 = arith.constant 0 : i32
    %c0_i32_1 = arith.constant 0 : i32
    return %c0_i32, %c0_i32_0 : i32, i32
  }
  func.func @transform_5(%arg0: i32) -> (i32, i32) {
    %c0_i32 = arith.constant 0 : i32
    %c0_i32_0 = arith.constant 0 : i32
    return %arg0, %c0_i32 : i32, i32
  }
  func.func @transform_6(%arg0: i32) -> (i32, i32) {
    %c0_i32 = arith.constant 0 : i32
    %c0_i32_0 = arith.constant 0 : i32
    %c0_i32_1 = arith.constant 0 : i32
    return %c0_i32, %c0_i32_0 : i32, i32
  }
  func.func @transform_7(%arg0: i32) -> (i32, i32) {
    %c0_i32 = arith.constant 0 : i32
    %c0_i32_0 = arith.constant 0 : i32
    %c0_i32_1 = arith.constant 0 : i32
    return %c0_i32, %c0_i32_0 : i32, i32
  }
  func.func @transform_8(%arg0: i32) -> (i32, i32) {
    %c0_i32 = arith.constant 0 : i32
    %c0_i32_0 = arith.constant 0 : i32
    %c0_i32_1 = arith.constant 0 : i32
    return %c0_i32, %c0_i32_0 : i32, i32
  }
  func.func @transform_9(%arg0: i32) -> (i32, i32) {
    %c0_i32 = arith.constant 0 : i32
    %c0_i32_0 = arith.constant 0 : i32
    return %arg0, %c0_i32 : i32, i32
  }
  func.func @transform_10(%arg0: i32) -> (i32, i32) {
    %c0_i32 = arith.constant 0 : i32
    %c0_i32_0 = arith.constant 0 : i32
    return %arg0, %c0_i32 : i32, i32
  }
}

module attributes {stable_mosaic.version = 11 : i64} {
  func.func @_cmpm_kernel(%arg0: i32, %arg1: memref<128x128xf32, #tpu.memory_space<vmem>>, %arg2: memref<128x128xf32, #tpu.memory_space<vmem>>, %arg3: memref<128x1xi32, #tpu.memory_space<vmem>>, %arg4: memref<1x128xi32, #tpu.memory_space<vmem>>, %arg5: memref<1x128xf32, #tpu.memory_space<vmem>>, %arg6: memref<128x1xf32, #tpu.memory_space<vmem>>, %arg7: memref<1x128xf32, #tpu.memory_space<vmem>>, %arg8: memref<1x128xf32, #tpu.memory_space<vmem>>, %arg9: memref<1x128xf32, #tpu.memory_space<vmem>>, %arg10: memref<128x128xf32, #tpu.memory_space<vmem>>, %arg11: memref<128x1xf32, #tpu.memory_space<vmem>>) attributes {dimension_semantics = [#tpu.dimension_semantics<parallel>], iteration_bounds = array<i64: 1>, scalar_prefetch = 0 : i64, scratch_operands = 0 : i64, tpu.core_type = #tpu.core_type<tc>, window_params = [{pipeline_mode = #tpu.pipeline_mode<synchronous>, transform_indices = @transform_0, window_bounds = array<i64: 128, 128>}, {pipeline_mode = #tpu.pipeline_mode<synchronous>, transform_indices = @transform_1, window_bounds = array<i64: 128, 128>}, {transform_indices = @transform_2, window_bounds = array<i64: 128, 1>}, {pipeline_mode = #tpu.pipeline_mode<synchronous>, transform_indices = @transform_3, window_bounds = array<i64: 1, 128>}, {pipeline_mode = #tpu.pipeline_mode<synchronous>, transform_indices = @transform_4, window_bounds = array<i64: 1, 128>}, {transform_indices = @transform_5, window_bounds = array<i64: 128, 1>}, {pipeline_mode = #tpu.pipeline_mode<synchronous>, transform_indices = @transform_6, window_bounds = array<i64: 1, 128>}, {pipeline_mode = #tpu.pipeline_mode<synchronous>, transform_indices = @transform_7, window_bounds = array<i64: 1, 128>}, {pipeline_mode = #tpu.pipeline_mode<synchronous>, transform_indices = @transform_8, window_bounds = array<i64: 1, 128>}, {transform_indices = @transform_9, window_bounds = array<i64: 128, 128>}, {transform_indices = @transform_10, window_bounds = array<i64: 128, 1>}]} {
    %c128_i32 = arith.constant 128 : i32
    %0 = arith.muli %arg0, %c128_i32 : i32
    %1 = tpu.assume_multiple %0, 128 : i32
    %c0 = arith.constant 0 : index
    %c0_0 = arith.constant 0 : index
    %2 = vector.load %arg3[%c0, %c0_0] : memref<128x1xi32, #tpu.memory_space<vmem>>, vector<128x1xi32>
    %c0_1 = arith.constant 0 : index
    %c0_2 = arith.constant 0 : index
    %3 = vector.load %arg4[%c0_1, %c0_2] : memref<1x128xi32, #tpu.memory_space<vmem>>, vector<1x128xi32>
    %4 = vector.broadcast %2 : vector<128x1xi32> to vector<128x128xi32>
    %5 = vector.broadcast %3 : vector<1x128xi32> to vector<128x128xi32>
    %6 = arith.cmpi eq, %4, %5 : vector<128x128xi32>
    %c0_3 = arith.constant 0 : index
    %c0_4 = arith.constant 0 : index
    %7 = vector.load %arg5[%c0_3, %c0_4] : memref<1x128xf32, #tpu.memory_space<vmem>>, vector<1x128xf32>
    %cst = arith.constant -18.420681 : f32
    %8 = vector.shape_cast %7 : vector<1x128xf32> to vector<1x128xf32>
    %9 = vector.broadcast %8 : vector<1x128xf32> to vector<128x128xf32>
    %10 = vector.broadcast %cst : f32 to vector<128x128xf32>
    %11 = arith.select %6, %9, %10 : vector<128x128xi1>, vector<128x128xf32>
    %c0_5 = arith.constant 0 : index
    %c0_6 = arith.constant 0 : index
    %12 = vector.load %arg9[%c0_5, %c0_6] : memref<1x128xf32, #tpu.memory_space<vmem>>, vector<1x128xf32>
    %13 = arith.index_cast %1 : i32 to index
    %c0_7 = arith.constant 0 : index
    %14 = vector.load %arg1[%13, %c0_7] : memref<128x128xf32, #tpu.memory_space<vmem>>, vector<128x128xf32>
    %c0_8 = arith.constant 0 : index
    %c0_9 = arith.constant 0 : index
    %15 = vector.load %arg2[%c0_8, %c0_9] : memref<128x128xf32, #tpu.memory_space<vmem>>, vector<128x128xf32>
    %cst_10 = arith.constant dense<0.000000e+00> : vector<128x128xf32>
    %16 = tpu.matmul %14, %15, %cst_10 {dimension_numbers = #tpu.dot_dimension_numbers<[1], [1], [0], [0], [0, 0, 1, 0], [], []>} : vector<128x128xf32>, vector<128x128xf32>, vector<128x128xf32> -> vector<128x128xf32>
    %c0_11 = arith.constant 0 : index
    %c0_12 = arith.constant 0 : index
    %17 = vector.load %arg8[%c0_11, %c0_12] : memref<1x128xf32, #tpu.memory_space<vmem>>, vector<1x128xf32>
    %18 = vector.broadcast %17 : vector<1x128xf32> to vector<128x128xf32>
    %19 = arith.mulf %16, %18 : vector<128x128xf32>
    %c0_13 = arith.constant 0 : index
    %c0_14 = arith.constant 0 : index
    %20 = vector.load %arg6[%c0_13, %c0_14] : memref<128x1xf32, #tpu.memory_space<vmem>>, vector<128x1xf32>
    %21 = vector.broadcast %20 : vector<128x1xf32> to vector<128x128xf32>
    %22 = arith.mulf %19, %21 : vector<128x128xf32>
    %c0_15 = arith.constant 0 : index
    %c0_16 = arith.constant 0 : index
    %23 = vector.load %arg10[%c0_15, %c0_16] : memref<128x128xf32, #tpu.memory_space<vmem>>, vector<128x128xf32>
    tpu.vector_store %arg10[%c0_15, %c0_16], %22 {strides = array<i32>} : memref<128x128xf32, #tpu.memory_space<vmem>>, vector<128x128xf32>,
    %24 = vector.broadcast %12 : vector<1x128xf32> to vector<128x128xf32>
    %25 = arith.addf %19, %24 : vector<128x128xf32>
    %cst_17 = arith.constant dense<0xFF800000> : vector<128xf32>
    %26 = vector.multi_reduction <maximumf>, %25, %cst_17 [1] : vector<128x128xf32> to vector<128xf32>
    %27 = vector.shape_cast %26 : vector<128xf32> to vector<128x1xf32>
    %28 = vector.broadcast %27 : vector<128x1xf32> to vector<128x128xf32>
    %29 = arith.subf %25, %28 : vector<128x128xf32>
    %30 = math.exp %29 : vector<128x128xf32>
    %cst_18 = arith.constant dense<0.000000e+00> : vector<128xf32>
    %31 = vector.multi_reduction <add>, %30, %cst_18 [1] : vector<128x128xf32> to vector<128xf32>
    %32 = vector.shape_cast %31 : vector<128xf32> to vector<128x1xf32>
    %33 = arith.subf %29, %11 : vector<128x128xf32>
    %34 = arith.mulf %30, %33 : vector<128x128xf32>
    %cst_19 = arith.constant dense<0.000000e+00> : vector<128xf32>
    %35 = vector.multi_reduction <add>, %34, %cst_19 [1] : vector<128x128xf32> to vector<128xf32>
    %36 = vector.shape_cast %35 : vector<128xf32> to vector<128x1xf32>
    %37 = tpu.reciprocal %32 {approx = true} : vector<128x1xf32> -> vector<128x1xf32>
    %38 = arith.mulf %36, %37 : vector<128x1xf32>
    %39 = math.log %32 : vector<128x1xf32>
    %40 = arith.subf %38, %39 : vector<128x1xf32>
    %41 = arith.index_cast %1 : i32 to index
    %c0_20 = arith.constant 0 : index
    %42 = vector.load %arg2[%41, %c0_20] : memref<128x128xf32, #tpu.memory_space<vmem>>, vector<128x128xf32>
    %c0_21 = arith.constant 0 : index
    %c0_22 = arith.constant 0 : index
    %43 = vector.load %arg1[%c0_21, %c0_22] : memref<128x128xf32, #tpu.memory_space<vmem>>, vector<128x128xf32>
    %cst_23 = arith.constant dense<0.000000e+00> : vector<128x128xf32>
    %44 = tpu.matmul %42, %43, %cst_23 {dimension_numbers = #tpu.dot_dimension_numbers<[1], [1], [0], [0], [0, 0, 1, 0], [], []>} : vector<128x128xf32>, vector<128x128xf32>, vector<128x128xf32> -> vector<128x128xf32>
    %c0_24 = arith.constant 0 : index
    %c0_25 = arith.constant 0 : index
    %45 = vector.load %arg7[%c0_24, %c0_25] : memref<1x128xf32, #tpu.memory_space<vmem>>, vector<1x128xf32>
    %46 = vector.broadcast %45 : vector<1x128xf32> to vector<128x128xf32>
    %47 = arith.mulf %44, %46 : vector<128x128xf32>
    %48 = vector.broadcast %12 : vector<1x128xf32> to vector<128x128xf32>
    %49 = arith.addf %47, %48 : vector<128x128xf32>
    %cst_26 = arith.constant dense<0xFF800000> : vector<128xf32>
    %50 = vector.multi_reduction <maximumf>, %49, %cst_26 [1] : vector<128x128xf32> to vector<128xf32>
    %51 = vector.shape_cast %50 : vector<128xf32> to vector<128x1xf32>
    %52 = vector.broadcast %51 : vector<128x1xf32> to vector<128x128xf32>
    %53 = arith.subf %49, %52 : vector<128x128xf32>
    %54 = math.exp %53 : vector<128x128xf32>
    %cst_27 = arith.constant dense<0.000000e+00> : vector<128xf32>
    %55 = vector.multi_reduction <add>, %54, %cst_27 [1] : vector<128x128xf32> to vector<128xf32>
    %56 = vector.shape_cast %55 : vector<128xf32> to vector<128x1xf32>
    %57 = arith.subf %53, %11 : vector<128x128xf32>
    %58 = arith.mulf %54, %57 : vector<128x128xf32>
    %cst_28 = arith.constant dense<0.000000e+00> : vector<128xf32>
    %59 = vector.multi_reduction <add>, %58, %cst_28 [1] : vector<128x128xf32> to vector<128xf32>
    %60 = vector.shape_cast %59 : vector<128xf32> to vector<128x1xf32>
    %61 = tpu.reciprocal %56 {approx = true} : vector<128x1xf32> -> vector<128x1xf32>
    %62 = arith.mulf %60, %61 : vector<128x1xf32>
    %63 = math.log %56 : vector<128x1xf32>
    %64 = arith.subf %62, %63 : vector<128x1xf32>
    %65 = arith.addf %40, %64 : vector<128x1xf32>
    %c0_29 = arith.constant 0 : index
    %c0_30 = arith.constant 0 : index
    %66 = vector.load %arg11[%c0_29, %c0_30] : memref<128x1xf32, #tpu.memory_space<vmem>>, vector<128x1xf32>
    tpu.vector_store %arg11[%c0_29, %c0_30], %65 {strides = array<i32>} : memref<128x1xf32, #tpu.memory_space<vmem>>, vector<128x1xf32>,
    return
  }
  func.func @transform_0(%arg0: i32) -> (i32, i32) {
    %c0_i32 = arith.constant 0 : i32
    %c0_i32_0 = arith.constant 0 : i32
    %c0_i32_1 = arith.constant 0 : i32
    return %c0_i32, %c0_i32_0 : i32, i32
  }
  func.func @transform_1(%arg0: i32) -> (i32, i32) {
    %c0_i32 = arith.constant 0 : i32
    %c0_i32_0 = arith.constant 0 : i32
    %c0_i32_1 = arith.constant 0 : i32
    return %c0_i32, %c0_i32_0 : i32, i32
  }
  func.func @transform_2(%arg0: i32) -> (i32, i32) {
    %c0_i32 = arith.constant 0 : i32
    %c0_i32_0 = arith.constant 0 : i32
    return %arg0, %c0_i32 : i32, i32
  }
  func.func @transform_3(%arg0: i32) -> (i32, i32) {
    %c0_i32 = arith.constant 0 : i32
    %c0_i32_0 = arith.constant 0 : i32
    %c0_i32_1 = arith.constant 0 : i32
    return %c0_i32, %c0_i32_0 : i32, i32
  }
  func.func @transform_4(%arg0: i32) -> (i32, i32) {
    %c0_i32 = arith.constant 0 : i32
    %c0_i32_0 = arith.constant 0 : i32
    %c0_i32_1 = arith.constant 0 : i32
    return %c0_i32, %c0_i32_0 : i32, i32
  }
  func.func @transform_5(%arg0: i32) -> (i32, i32) {
    %c0_i32 = arith.constant 0 : i32
    %c0_i32_0 = arith.constant 0 : i32
    return %arg0, %c0_i32 : i32, i32
  }
  func.func @transform_6(%arg0: i32) -> (i32, i32) {
    %c0_i32 = arith.constant 0 : i32
    %c0_i32_0 = arith.constant 0 : i32
    %c0_i32_1 = arith.constant 0 : i32
    return %c0_i32, %c0_i32_0 : i32, i32
  }
  func.func @transform_7(%arg0: i32) -> (i32, i32) {
    %c0_i32 = arith.constant 0 : i32
    %c0_i32_0 = arith.constant 0 : i32
    %c0_i32_1 = arith.constant 0 : i32
    return %c0_i32, %c0_i32_0 : i32, i32
  }
  func.func @transform_8(%arg0: i32) -> (i32, i32) {
    %c0_i32 = arith.constant 0 : i32
    %c0_i32_0 = arith.constant 0 : i32
    %c0_i32_1 = arith.constant 0 : i32
    return %c0_i32, %c0_i32_0 : i32, i32
  }
  func.func @transform_9(%arg0: i32) -> (i32, i32) {
    %c0_i32 = arith.constant 0 : i32
    %c0_i32_0 = arith.constant 0 : i32
    return %arg0, %c0_i32 : i32, i32
  }
  func.func @transform_10(%arg0: i32) -> (i32, i32) {
    %c0_i32 = arith.constant 0 : i32
    %c0_i32_0 = arith.constant 0 : i32
    return %arg0, %c0_i32 : i32, i32
  }
}

</mosaic_0001>

<llo_original>
// kernel: tpu_custom_call.1
$region0: #{tpu_custom_call.1}
  #allocation0 [shape = 'u32[]', space=smem, size = 0x4, offset = 0x4, fixed_abs, tag = 'smem constant byte address 0x4 - core index']
  #allocation1 [shape = 'u32[144,128]{1,0:T(1,128)}', space=vmem, size = 0x12000, scoped, tag = 'internal scratch']
  %s0 = inlined_call_operand.vmem [shape: f32[128,128], index: 0, kind: input, shape index: {}]
  %s1 = inlined_call_operand.vmem [shape: f32[128,128], index: 1, kind: input, shape index: {}]
  %s2 = inlined_call_operand.vmem [shape: s32[128,1], index: 2, kind: input, shape index: {}]
  %s3 = inlined_call_operand.vmem [shape: s32[1,128], index: 3, kind: input, shape index: {}]
  %s4 = inlined_call_operand.vmem [shape: f32[1,128], index: 4, kind: input, shape index: {}]
  %s5 = inlined_call_operand.vmem [shape: f32[128,1], index: 5, kind: input, shape index: {}]
  %s6 = inlined_call_operand.vmem [shape: f32[1,128], index: 6, kind: input, shape index: {}]
  %s7 = inlined_call_operand.vmem [shape: f32[1,128], index: 7, kind: input, shape index: {}]
  %s8 = inlined_call_operand.vmem [shape: f32[1,128], index: 8, kind: input, shape index: {}]
  %s9 = inlined_call_operand.hbm [shape: f32[128,128], index: 9, kind: output, shape index: {0}]
  %s10 = inlined_call_operand.vmem [shape: f32[128,1], index: 10, kind: output, shape index: {1}]
  %11 = xla_tuple %s9, %s10
  %s12 = sld [smem:[#allocation0]]
  $region54: #{tpu_custom_call.1} parent=0
    _
  %s14 = ssub.s32 1, %s12
  %s15 = scalar_select 0, %s14, %s12
  $region1: #{tpu_custom_call.1} parent=0
    #allocation2 [shape = 'u8[65536]{0}', space=vmem, size = 0x10000, scoped, tag = 'output window, operand 0, single buffered']
    #allocation3 [shape = 's32[1]{0}', space=sflag, size = 0x4, scoped, tag = 'scoped memory for tpu_custom_call.1']
    %16 = vsyncpa [#allocation3], 0
    // Predicated region
    $region2: #{tpu_custom_call.1} parent=1 // pred_check
      _
    $region3: #{tpu_custom_call.1} parent=1 // pred_check_branch
      %18 = sbr.rel (0) target = $region5
    $region4: #{tpu_custom_call.1} parent=1 // pred_region
      _
    $region5: #{tpu_custom_call.1} parent=1 // pred_fallthru
      _
    // Predicated region
    $region6: #{tpu_custom_call.1} parent=1 // pred_check
      _
    $region7: #{tpu_custom_call.1} parent=1 // pred_check_branch
      %20 = sbr.rel (0) target = $region9
    $region8: #{tpu_custom_call.1} parent=1 // pred_region
      _
    $region9: #{tpu_custom_call.1} parent=1 // pred_fallthru
      _
    // Predicated region
    $region10: #{tpu_custom_call.1} parent=1 // pred_check
      _
    $region11: #{tpu_custom_call.1} parent=1 // pred_check_branch
      %22 = sbr.rel (0) target = $region13
    $region12: #{tpu_custom_call.1} parent=1 // pred_region
      _
    $region13: #{tpu_custom_call.1} parent=1 // pred_fallthru
      _
    // Predicated region
    $region14: #{tpu_custom_call.1} parent=1 // pred_check
      _
    $region15: #{tpu_custom_call.1} parent=1 // pred_check_branch
      %24 = sbr.rel (0) target = $region17
    $region16: #{tpu_custom_call.1} parent=1 // pred_region
      _
    $region17: #{tpu_custom_call.1} parent=1 // pred_fallthru
      _
    // Predicated region
    $region18: #{tpu_custom_call.1} parent=1 // pred_check
      _
    $region19: #{tpu_custom_call.1} parent=1 // pred_check_branch
      %26 = sbr.rel (0) target = $region21
    $region20: #{tpu_custom_call.1} parent=1 // pred_region
      _
    $region21: #{tpu_custom_call.1} parent=1 // pred_fallthru
      _
    // Predicated region
    $region22: #{tpu_custom_call.1} parent=1 // pred_check
      _
    $region23: #{tpu_custom_call.1} parent=1 // pred_check_branch
      %28 = sbr.rel (0) target = $region25
    $region24: #{tpu_custom_call.1} parent=1 // pred_region
      _
    $region25: #{tpu_custom_call.1} parent=1 // pred_fallthru
      _
    // Predicated region
    $region26: #{tpu_custom_call.1} parent=1 // pred_check
      _
    $region27: #{tpu_custom_call.1} parent=1 // pred_check_branch
      %30 = sbr.rel (0) target = $region29
    $region28: #{tpu_custom_call.1} parent=1 // pred_region
      _
    $region29: #{tpu_custom_call.1} parent=1 // pred_fallthru
      _
    // Predicated region
    $region30: #{tpu_custom_call.1} parent=1 // pred_check
      _
    $region31: #{tpu_custom_call.1} parent=1 // pred_check_branch
      %32 = sbr.rel (0) target = $region33
    $region32: #{tpu_custom_call.1} parent=1 // pred_region
      _
    $region33: #{tpu_custom_call.1} parent=1 // pred_fallthru
      _
    // Predicated region
    $region34: #{tpu_custom_call.1} parent=1 // pred_check
      _
    $region35: #{tpu_custom_call.1} parent=1 // pred_check_branch
      %34 = sbr.rel (0) target = $region37
    $region36: #{tpu_custom_call.1} parent=1 // pred_region
      _
    $region37: #{tpu_custom_call.1} parent=1 // pred_fallthru
      _
    %s35 = smul.u32 0, 128
    %v36 = vld [vmem:[%s2] sm:$0xff]
    %v37 = vld [vmem:[%s2 + $0x8] sm:$0xff]
    %v38 = vld [vmem:[%s2 + $0x10] sm:$0xff]
    %v39 = vld [vmem:[%s2 + $0x18] sm:$0xff]
    %v40 = vld [vmem:[%s2 + $0x20] sm:$0xff]
    %v41 = vld [vmem:[%s2 + $0x28] sm:$0xff]
    %v42 = vld [vmem:[%s2 + $0x30] sm:$0xff]
    %v43 = vld [vmem:[%s2 + $0x38] sm:$0xff]
    %v44 = vld [vmem:[%s2 + $0x40] sm:$0xff]
    %v45 = vld [vmem:[%s2 + $0x48] sm:$0xff]
    %v46 = vld [vmem:[%s2 + $0x50] sm:$0xff]
    %v47 = vld [vmem:[%s2 + $0x58] sm:$0xff]
    %v48 = vld [vmem:[%s2 + $0x60] sm:$0xff]
    %v49 = vld [vmem:[%s2 + $0x68] sm:$0xff]
    %v50 = vld [vmem:[%s2 + $0x70] sm:$0xff]
    %v51 = vld [vmem:[%s2 + $0x78] sm:$0xff]
    %v52 = vld [vmem:[%s3] sm:$0x1]
    %53 = vset.pattern.permute.xlu0 0
    %54 = vperm.xlu0 %53, %v36
    %v55 = vpop.permute.xlu0 %54
    %56 = vset.pattern.permute.xlu0 0
    %57 = vperm.xlu0 %56, %v37
    %v58 = vpop.permute.xlu0 %57
    %59 = vset.pattern.permute.xlu0 0
    %60 = vperm.xlu0 %59, %v38
    %v61 = vpop.permute.xlu0 %60
    %62 = vset.pattern.permute.xlu0 0
    %63 = vperm.xlu0 %62, %v39
    %v64 = vpop.permute.xlu0 %63
    %65 = vset.pattern.permute.xlu0 0
    %66 = vperm.xlu0 %65, %v40
    %v67 = vpop.permute.xlu0 %66
    %68 = vset.pattern.permute.xlu0 0
    %69 = vperm.xlu0 %68, %v41
    %v70 = vpop.permute.xlu0 %69
    %71 = vset.pattern.permute.xlu0 0
    %72 = vperm.xlu0 %71, %v42
    %v73 = vpop.permute.xlu0 %72
    %74 = vset.pattern.permute.xlu0 0
    %75 = vperm.xlu0 %74, %v43
    %v76 = vpop.permute.xlu0 %75
    %77 = vset.pattern.permute.xlu0 0
    %78 = vperm.xlu0 %77, %v44
    %v79 = vpop.permute.xlu0 %78
    %80 = vset.pattern.permute.xlu0 0
    %81 = vperm.xlu0 %80, %v45
    %v82 = vpop.permute.xlu0 %81
    %83 = vset.pattern.permute.xlu0 0
    %84 = vperm.xlu0 %83, %v46
    %v85 = vpop.permute.xlu0 %84
    %86 = vset.pattern.permute.xlu0 0
    %87 = vperm.xlu0 %86, %v47
    %v88 = vpop.permute.xlu0 %87
    %89 = vset.pattern.permute.xlu0 0
    %90 = vperm.xlu0 %89, %v48
    %v91 = vpop.permute.xlu0 %90
    %92 = vset.pattern.permute.xlu0 0
    %93 = vperm.xlu0 %92, %v49
    %v94 = vpop.permute.xlu0 %93
    %95 = vset.pattern.permute.xlu0 0
    %96 = vperm.xlu0 %95, %v50
    %v97 = vpop.permute.xlu0 %96
    %98 = vset.pattern.permute.xlu0 0
    %99 = vperm.xlu0 %98, %v51
    %v100 = vpop.permute.xlu0 %99
    %v101 = vlaneseq
    %v102 = vshrl.u32 %v101, 7
    %v103 = vsub.s32 0, %v102
    %v104 = vrot.slane %v52, %v103
    %vm105 = vcmp.eq.s32.totalorder %v55, %v104
    %vm106 = vcmp.eq.s32.totalorder %v58, %v104
    %vm107 = vcmp.eq.s32.totalorder %v61, %v104
    %vm108 = vcmp.eq.s32.totalorder %v64, %v104
    %vm109 = vcmp.eq.s32.totalorder %v67, %v104
    %vm110 = vcmp.eq.s32.totalorder %v70, %v104
    %vm111 = vcmp.eq.s32.totalorder %v73, %v104
    %vm112 = vcmp.eq.s32.totalorder %v76, %v104
    %vm113 = vcmp.eq.s32.totalorder %v79, %v104
    %vm114 = vcmp.eq.s32.totalorder %v82, %v104
    %vm115 = vcmp.eq.s32.totalorder %v85, %v104
    %vm116 = vcmp.eq.s32.totalorder %v88, %v104
    %vm117 = vcmp.eq.s32.totalorder %v91, %v104
    %vm118 = vcmp.eq.s32.totalorder %v94, %v104
    %vm119 = vcmp.eq.s32.totalorder %v97, %v104
    %vm120 = vcmp.eq.s32.totalorder %v100, %v104
    %v121 = vld [vmem:[%s4] sm:$0x1]
    %v123 = vlaneseq
    %v124 = vshrl.u32 %v123, 7
    %v125 = vsub.s32 0, %v124
    %v126 = vrot.slane %v121, %v125
    %v128 = vsel %vm105, %v126, -18.420681
    %v129 = vsel %vm106, %v126, -18.420681
    %v130 = vsel %vm107, %v126, -18.420681
    %v131 = vsel %vm108, %v126, -18.420681
    %v132 = vsel %vm109, %v126, -18.420681
    %v133 = vsel %vm110, %v126, -18.420681
    %v134 = vsel %vm111, %v126, -18.420681
    %v135 = vsel %vm112, %v126, -18.420681
    %v136 = vsel %vm113, %v126, -18.420681
    %v137 = vsel %vm114, %v126, -18.420681
    %v138 = vsel %vm115, %v126, -18.420681
    %v139 = vsel %vm116, %v126, -18.420681
    %v140 = vsel %vm117, %v126, -18.420681
    %v141 = vsel %vm118, %v126, -18.420681
    %v142 = vsel %vm119, %v126, -18.420681
    %v143 = vsel %vm120, %v126, -18.420681
    %v144 = vld [vmem:[%s8] sm:$0x1]
    %s145 = scalar_lea.vmem %s0, %s35
    %v146 = vld [vmem:[%s145] sm:$0xff]
    %v147 = vld [vmem:[%s145 + $0x8] sm:$0xff]
    %v148 = vld [vmem:[%s145 + $0x10] sm:$0xff]
    %v149 = vld [vmem:[%s145 + $0x18] sm:$0xff]
    %v150 = vld [vmem:[%s145 + $0x20] sm:$0xff]
    %v151 = vld [vmem:[%s145 + $0x28] sm:$0xff]
    %v152 = vld [vmem:[%s145 + $0x30] sm:$0xff]
    %v153 = vld [vmem:[%s145 + $0x38] sm:$0xff]
    %v154 = vld [vmem:[%s145 + $0x40] sm:$0xff]
    %v155 = vld [vmem:[%s145 + $0x48] sm:$0xff]
    %v156 = vld [vmem:[%s145 + $0x50] sm:$0xff]
    %v157 = vld [vmem:[%s145 + $0x58] sm:$0xff]
    %v158 = vld [vmem:[%s145 + $0x60] sm:$0xff]
    %v159 = vld [vmem:[%s145 + $0x68] sm:$0xff]
    %v160 = vld [vmem:[%s145 + $0x70] sm:$0xff]
    %v161 = vld [vmem:[%s145 + $0x78] sm:$0xff]
    %v162 = vld [vmem:[%s1] sm:$0xff]
    %v163 = vld [vmem:[%s1 + $0x8] sm:$0xff]
    %v164 = vld [vmem:[%s1 + $0x10] sm:$0xff]
    %v165 = vld [vmem:[%s1 + $0x18] sm:$0xff]
    %v166 = vld [vmem:[%s1 + $0x20] sm:$0xff]
    %v167 = vld [vmem:[%s1 + $0x28] sm:$0xff]
    %v168 = vld [vmem:[%s1 + $0x30] sm:$0xff]
    %v169 = vld [vmem:[%s1 + $0x38] sm:$0xff]
    %v170 = vld [vmem:[%s1 + $0x40] sm:$0xff]
    %v171 = vld [vmem:[%s1 + $0x48] sm:$0xff]
    %v172 = vld [vmem:[%s1 + $0x50] sm:$0xff]
    %v173 = vld [vmem:[%s1 + $0x58] sm:$0xff]
    %v174 = vld [vmem:[%s1 + $0x60] sm:$0xff]
    %v175 = vld [vmem:[%s1 + $0x68] sm:$0xff]
    %v176 = vld [vmem:[%s1 + $0x70] sm:$0xff]
    %v177 = vld [vmem:[%s1 + $0x78] sm:$0xff]
    %178 = vmatprep.subr.mxu0 0.0
    %179 = vmatpush1.xpose.msra.mxu0 %v177
    %180 = vmatprep.subr.mxu0 0.0
    %181 = vmatpush1.xpose.msra.mxu0 %v176
    %182 = vmatprep.subr.mxu0 0.0
    %183 = vmatpush1.xpose.msra.mxu0 %v175
    %184 = vmatprep.subr.mxu0 0.0
    %185 = vmatpush1.xpose.msra.mxu0 %v174
    %186 = vmatprep.subr.mxu0 0.0
    %187 = vmatpush1.xpose.msra.mxu0 %v173
    %188 = vmatprep.subr.mxu0 0.0
    %189 = vmatpush1.xpose.msra.mxu0 %v172
    %190 = vmatprep.subr.mxu0 0.0
    %191 = vmatpush1.xpose.msra.mxu0 %v171
    %192 = vmatprep.subr.mxu0 0.0
    %193 = vmatpush1.xpose.msra.mxu0 %v170
    %194 = vmatprep.subr.mxu0 0.0
    %195 = vmatpush1.xpose.msra.mxu0 %v169
    %196 = vmatprep.subr.mxu0 0.0
    %197 = vmatpush1.xpose.msra.mxu0 %v168
    %198 = vmatprep.subr.mxu0 0.0
    %199 = vmatpush1.xpose.msra.mxu0 %v167
    %200 = vmatprep.subr.mxu0 0.0
    %201 = vmatpush1.xpose.msra.mxu0 %v166
    %202 = vmatprep.subr.mxu0 0.0
    %203 = vmatpush1.xpose.msra.mxu0 %v165
    %204 = vmatprep.subr.mxu0 0.0
    %205 = vmatpush1.xpose.msra.mxu0 %v164
    %206 = vmatprep.subr.mxu0 0.0
    %207 = vmatpush1.xpose.msra.mxu0 %v163
    %208 = vmatprep.subr.mxu0 0.0
    %209 = vmatpush1.xpose.msra.mxu0 %v162
    %210 = vmatprep.subr.mxu0 0.0
    %211 = vmatpush2.xpose.msra.mxu0 0.0
    %212 = vmatprep.subr.mxu0 0.0
    %213 = vmatpush2.xpose.msra.mxu0 0.0
    %214 = vmatprep.subr.mxu0 0.0
    %215 = vmatpush2.xpose.msra.mxu0 0.0
    %216 = vmatprep.subr.mxu0 0.0
    %217 = vmatpush2.xpose.msra.mxu0 0.0
    %218 = vmatprep.subr.mxu0 0.0
    %219 = vmatpush2.xpose.msra.mxu0 0.0
    %220 = vmatprep.subr.mxu0 0.0
    %221 = vmatpush2.xpose.msra.mxu0 0.0
    %222 = vmatprep.subr.mxu0 0.0
    %223 = vmatpush2.xpose.msra.mxu0 0.0
    %224 = vmatprep.subr.mxu0 0.0
    %225 = vmatpush2.xpose.msra.mxu0 0.0
    %226 = vmatprep.subr.mxu0 0.0
    %227 = vmatpush2.xpose.msra.mxu0 0.0
    %228 = vmatprep.subr.mxu0 0.0
    %229 = vmatpush2.xpose.msra.mxu0 0.0
    %230 = vmatprep.subr.mxu0 0.0
    %231 = vmatpush2.xpose.msra.mxu0 0.0
    %232 = vmatprep.subr.mxu0 0.0
    %233 = vmatpush2.xpose.msra.mxu0 0.0
    %234 = vmatprep.subr.mxu0 0.0
    %235 = vmatpush2.xpose.msra.mxu0 0.0
    %236 = vmatprep.subr.mxu0 0.0
    %237 = vmatpush2.xpose.msra.mxu0 0.0
    %238 = vmatprep.subr.mxu0 0.0
    %239 = vmatpush2.xpose.msra.mxu0 0.0
    %240 = vmatprep.subr.mxu0 0.0
    %241 = vmatpush2.xpose.msra.mxu0 0.0
    %242 = vmatprep.mubr.f32.mxu0 0.0
    %243 = vmatmul.mubr.f32.gmra.mxu0 %v146
    %v244 = vpop.f32.mrf.mxu0
    %v245 = vadd.f32 0.0, %v244
    %v246 = vpop.f32.mrf.mxu0
    %247 = vmatprep.mubr.f32.mxu0 0.0
    %248 = vmatmul.mubr.f32.gmra.mxu0 %v147
    %v249 = vpop.f32.mrf.mxu0
    %v250 = vadd.f32 0.0, %v249
    %v251 = vpop.f32.mrf.mxu0
    %252 = vmatprep.mubr.f32.mxu0 0.0
    %253 = vmatmul.mubr.f32.gmra.mxu0 %v148
    %v254 = vpop.f32.mrf.mxu0
    %v255 = vadd.f32 0.0, %v254
    %v256 = vpop.f32.mrf.mxu0
    %257 = vmatprep.mubr.f32.mxu0 0.0
    %258 = vmatmul.mubr.f32.gmra.mxu0 %v149
    %v259 = vpop.f32.mrf.mxu0
    %v260 = vadd.f32 0.0, %v259
    %v261 = vpop.f32.mrf.mxu0
    %262 = vmatprep.mubr.f32.mxu0 0.0
    %263 = vmatmul.mubr.f32.gmra.mxu0 %v150
    %v264 = vpop.f32.mrf.mxu0
    %v265 = vadd.f32 0.0, %v264
    %v266 = vpop.f32.mrf.mxu0
    %267 = vmatprep.mubr.f32.mxu0 0.0
    %268 = vmatmul.mubr.f32.gmra.mxu0 %v151
    %v269 = vpop.f32.mrf.mxu0
    %v270 = vadd.f32 0.0, %v269
    %v271 = vpop.f32.mrf.mxu0
    %272 = vmatprep.mubr.f32.mxu0 0.0
    %273 = vmatmul.mubr.f32.gmra.mxu0 %v152
    %v274 = vpop.f32.mrf.mxu0
    %v275 = vadd.f32 0.0, %v274
    %v276 = vpop.f32.mrf.mxu0
    %277 = vmatprep.mubr.f32.mxu0 0.0
    %278 = vmatmul.mubr.f32.gmra.mxu0 %v153
    %v279 = vpop.f32.mrf.mxu0
    %v280 = vadd.f32 0.0, %v279
    %v281 = vpop.f32.mrf.mxu0
    %282 = vmatprep.mubr.f32.mxu0 0.0
    %283 = vmatmul.mubr.f32.gmra.mxu0 %v154
    %v284 = vpop.f32.mrf.mxu0
    %v285 = vadd.f32 0.0, %v284
    %v286 = vpop.f32.mrf.mxu0
    %287 = vmatprep.mubr.f32.mxu0 0.0
    %288 = vmatmul.mubr.f32.gmra.mxu0 %v155
    %v289 = vpop.f32.mrf.mxu0
    %v290 = vadd.f32 0.0, %v289
    %v291 = vpop.f32.mrf.mxu0
    %292 = vmatprep.mubr.f32.mxu0 0.0
    %293 = vmatmul.mubr.f32.gmra.mxu0 %v156
    %v294 = vpop.f32.mrf.mxu0
    %v295 = vadd.f32 0.0, %v294
    %v296 = vpop.f32.mrf.mxu0
    %297 = vmatprep.mubr.f32.mxu0 0.0
    %298 = vmatmul.mubr.f32.gmra.mxu0 %v157
    %v299 = vpop.f32.mrf.mxu0
    %v300 = vadd.f32 0.0, %v299
    %v301 = vpop.f32.mrf.mxu0
    %302 = vmatprep.mubr.f32.mxu0 0.0
    %303 = vmatmul.mubr.f32.gmra.mxu0 %v158
    %v304 = vpop.f32.mrf.mxu0
    %v305 = vadd.f32 0.0, %v304
    %v306 = vpop.f32.mrf.mxu0
    %307 = vmatprep.mubr.f32.mxu0 0.0
    %308 = vmatmul.mubr.f32.gmra.mxu0 %v159
    %v309 = vpop.f32.mrf.mxu0
    %v310 = vadd.f32 0.0, %v309
    %v311 = vpop.f32.mrf.mxu0
    %312 = vmatprep.mubr.f32.mxu0 0.0
    %313 = vmatmul.mubr.f32.gmra.mxu0 %v160
    %v314 = vpop.f32.mrf.mxu0
    %v315 = vadd.f32 0.0, %v314
    %v316 = vpop.f32.mrf.mxu0
    %317 = vmatprep.mubr.f32.mxu0 0.0
    %318 = vmatmul.mubr.f32.gmra.mxu0 %v161
    %v319 = vpop.f32.mrf.mxu0
    %v320 = vadd.f32 0.0, %v319
    %v321 = vpop.f32.mrf.mxu0
    %322 = vdwg.mxu0
    %v323 = vld [vmem:[%s7] sm:$0x1]
    %v325 = vlaneseq
    %v326 = vshrl.u32 %v325, 7
    %v327 = vsub.s32 0, %v326
    %v328 = vrot.slane %v323, %v327
    %v330 = vmul.f32 %v245, %v328
    %v331 = vmul.f32 %v250, %v328
    %v332 = vmul.f32 %v255, %v328
    %v333 = vmul.f32 %v260, %v328
    %v334 = vmul.f32 %v265, %v328
    %v335 = vmul.f32 %v270, %v328
    %v336 = vmul.f32 %v275, %v328
    %v337 = vmul.f32 %v280, %v328
    %v338 = vmul.f32 %v285, %v328
    %v339 = vmul.f32 %v290, %v328
    %v340 = vmul.f32 %v295, %v328
    %v341 = vmul.f32 %v300, %v328
    %v342 = vmul.f32 %v305, %v328
    %v343 = vmul.f32 %v310, %v328
    %v344 = vmul.f32 %v315, %v328
    %v345 = vmul.f32 %v320, %v328
    %v346 = vld [vmem:[%s5] sm:$0xff]
    %v347 = vld [vmem:[%s5 + $0x8] sm:$0xff]
    %v348 = vld [vmem:[%s5 + $0x10] sm:$0xff]
    %v349 = vld [vmem:[%s5 + $0x18] sm:$0xff]
    %v350 = vld [vmem:[%s5 + $0x20] sm:$0xff]
    %v351 = vld [vmem:[%s5 + $0x28] sm:$0xff]
    %v352 = vld [vmem:[%s5 + $0x30] sm:$0xff]
    %v353 = vld [vmem:[%s5 + $0x38] sm:$0xff]
    %v354 = vld [vmem:[%s5 + $0x40] sm:$0xff]
    %v355 = vld [vmem:[%s5 + $0x48] sm:$0xff]
    %v356 = vld [vmem:[%s5 + $0x50] sm:$0xff]
    %v357 = vld [vmem:[%s5 + $0x58] sm:$0xff]
    %v358 = vld [vmem:[%s5 + $0x60] sm:$0xff]
    %v359 = vld [vmem:[%s5 + $0x68] sm:$0xff]
    %v360 = vld [vmem:[%s5 + $0x70] sm:$0xff]
    %v361 = vld [vmem:[%s5 + $0x78] sm:$0xff]
    %363 = vset.pattern.permute.xlu0 0
    %364 = vperm.xlu0 %363, %v346
    %v365 = vpop.permute.xlu0 %364
    %368 = vset.pattern.permute.xlu0 0
    %369 = vperm.xlu0 %368, %v347
    %v370 = vpop.permute.xlu0 %369
    %373 = vset.pattern.permute.xlu0 0
    %374 = vperm.xlu0 %373, %v348
    %v375 = vpop.permute.xlu0 %374
    %378 = vset.pattern.permute.xlu0 0
    %379 = vperm.xlu0 %378, %v349
    %v380 = vpop.permute.xlu0 %379
    %383 = vset.pattern.permute.xlu0 0
    %384 = vperm.xlu0 %383, %v350
    %v385 = vpop.permute.xlu0 %384
    %388 = vset.pattern.permute.xlu0 0
    %389 = vperm.xlu0 %388, %v351
    %v390 = vpop.permute.xlu0 %389
    %393 = vset.pattern.permute.xlu0 0
    %394 = vperm.xlu0 %393, %v352
    %v395 = vpop.permute.xlu0 %394
    %398 = vset.pattern.permute.xlu0 0
    %399 = vperm.xlu0 %398, %v353
    %v400 = vpop.permute.xlu0 %399
    %403 = vset.pattern.permute.xlu0 0
    %404 = vperm.xlu0 %403, %v354
    %v405 = vpop.permute.xlu0 %404
    %408 = vset.pattern.permute.xlu0 0
    %409 = vperm.xlu0 %408, %v355
    %v410 = vpop.permute.xlu0 %409
    %413 = vset.pattern.permute.xlu0 0
    %414 = vperm.xlu0 %413, %v356
    %v415 = vpop.permute.xlu0 %414
    %418 = vset.pattern.permute.xlu0 0
    %419 = vperm.xlu0 %418, %v357
    %v420 = vpop.permute.xlu0 %419
    %423 = vset.pattern.permute.xlu0 0
    %424 = vperm.xlu0 %423, %v358
    %v425 = vpop.permute.xlu0 %424
    %428 = vset.pattern.permute.xlu0 0
    %429 = vperm.xlu0 %428, %v359
    %v430 = vpop.permute.xlu0 %429
    %433 = vset.pattern.permute.xlu0 0
    %434 = vperm.xlu0 %433, %v360
    %v435 = vpop.permute.xlu0 %434
    %438 = vset.pattern.permute.xlu0 0
    %439 = vperm.xlu0 %438, %v361
    %v440 = vpop.permute.xlu0 %439
    %v442 = vmul.f32 %v330, %v365
    %v443 = vmul.f32 %v331, %v370
    %v444 = vmul.f32 %v332, %v375
    %v445 = vmul.f32 %v333, %v380
    %v446 = vmul.f32 %v334, %v385
    %v447 = vmul.f32 %v335, %v390
    %v448 = vmul.f32 %v336, %v395
    %v449 = vmul.f32 %v337, %v400
    %v450 = vmul.f32 %v338, %v405
    %v451 = vmul.f32 %v339, %v410
    %v452 = vmul.f32 %v340, %v415
    %v453 = vmul.f32 %v341, %v420
    %v454 = vmul.f32 %v342, %v425
    %v455 = vmul.f32 %v343, %v430
    %v456 = vmul.f32 %v344, %v435
    %v457 = vmul.f32 %v345, %v440
    %458 = vst [vmem:[#allocation2] sm:$0xff] %v442
    %459 = vst [vmem:[#allocation2 + $0x8] sm:$0xff] %v443
    %460 = vst [vmem:[#allocation2 + $0x10] sm:$0xff] %v444
    %461 = vst [vmem:[#allocation2 + $0x18] sm:$0xff] %v445
    %462 = vst [vmem:[#allocation2 + $0x20] sm:$0xff] %v446
    %463 = vst [vmem:[#allocation2 + $0x28] sm:$0xff] %v447
    %464 = vst [vmem:[#allocation2 + $0x30] sm:$0xff] %v448
    %465 = vst [vmem:[#allocation2 + $0x38] sm:$0xff] %v449
    %466 = vst [vmem:[#allocation2 + $0x40] sm:$0xff] %v450
    %467 = vst [vmem:[#allocation2 + $0x48] sm:$0xff] %v451
    %468 = vst [vmem:[#allocation2 + $0x50] sm:$0xff] %v452
    %469 = vst [vmem:[#allocation2 + $0x58] sm:$0xff] %v453
    %470 = vst [vmem:[#allocation2 + $0x60] sm:$0xff] %v454
    %471 = vst [vmem:[#allocation2 + $0x68] sm:$0xff] %v455
    %472 = vst [vmem:[#allocation2 + $0x70] sm:$0xff] %v456
    %473 = vst [vmem:[#allocation2 + $0x78] sm:$0xff] %v457
    %v475 = vlaneseq
    %v476 = vshrl.u32 %v475, 7
    %v477 = vsub.s32 0, %v476
    %v478 = vrot.slane %v144, %v477
    %v480 = vadd.f32 %v330, %v478
    %v481 = vadd.f32 %v331, %v478
    %v482 = vadd.f32 %v332, %v478
    %v483 = vadd.f32 %v333, %v478
    %v484 = vadd.f32 %v334, %v478
    %v485 = vadd.f32 %v335, %v478
    %v486 = vadd.f32 %v336, %v478
    %v487 = vadd.f32 %v337, %v478
    %v488 = vadd.f32 %v338, %v478
    %v489 = vadd.f32 %v339, %v478
    %v490 = vadd.f32 %v340, %v478
    %v491 = vadd.f32 %v341, %v478
    %v492 = vadd.f32 %v342, %v478
    %v493 = vadd.f32 %v343, %v478
    %v494 = vadd.f32 %v344, %v478
    %v495 = vadd.f32 %v345, %v478
    %496 = vmax.xlane.f32.xlu0 %v480
    %v497 = vpop.xlane.xlu0 %496
    %498 = vmax.xlane.f32.xlu0 %v481
    %v499 = vpop.xlane.xlu0 %498
    %500 = vmax.xlane.f32.xlu0 %v482
    %v501 = vpop.xlane.xlu0 %500
    %502 = vmax.xlane.f32.xlu0 %v483
    %v503 = vpop.xlane.xlu0 %502
    %504 = vmax.xlane.f32.xlu0 %v484
    %v505 = vpop.xlane.xlu0 %504
    %506 = vmax.xlane.f32.xlu0 %v485
    %v507 = vpop.xlane.xlu0 %506
    %508 = vmax.xlane.f32.xlu0 %v486
    %v509 = vpop.xlane.xlu0 %508
    %510 = vmax.xlane.f32.xlu0 %v487
    %v511 = vpop.xlane.xlu0 %510
    %512 = vmax.xlane.f32.xlu0 %v488
    %v513 = vpop.xlane.xlu0 %512
    %514 = vmax.xlane.f32.xlu0 %v489
    %v515 = vpop.xlane.xlu0 %514
    %516 = vmax.xlane.f32.xlu0 %v490
    %v517 = vpop.xlane.xlu0 %516
    %518 = vmax.xlane.f32.xlu0 %v491
    %v519 = vpop.xlane.xlu0 %518
    %520 = vmax.xlane.f32.xlu0 %v492
    %v521 = vpop.xlane.xlu0 %520
    %522 = vmax.xlane.f32.xlu0 %v493
    %v523 = vpop.xlane.xlu0 %522
    %524 = vmax.xlane.f32.xlu0 %v494
    %v525 = vpop.xlane.xlu0 %524
    %526 = vmax.xlane.f32.xlu0 %v495
    %v527 = vpop.xlane.xlu0 %526
    %v528 = vsub.f32 %v480, %v497
    %v529 = vsub.f32 %v481, %v499
    %v530 = vsub.f32 %v482, %v501
    %v531 = vsub.f32 %v483, %v503
    %v532 = vsub.f32 %v484, %v505
    %v533 = vsub.f32 %v485, %v507
    %v534 = vsub.f32 %v486, %v509
    %v535 = vsub.f32 %v487, %v511
    %v536 = vsub.f32 %v488, %v513
    %v537 = vsub.f32 %v489, %v515
    %v538 = vsub.f32 %v490, %v517
    %v539 = vsub.f32 %v491, %v519
    %v540 = vsub.f32 %v492, %v521
    %v541 = vsub.f32 %v493, %v523
    %v542 = vsub.f32 %v494, %v525
    %v543 = vsub.f32 %v495, %v527
    %v544 = vmul.f32 %v528, 1.442695
    %v545 = vpow.pop %v544
    %v546 = vmul.f32 %v529, 1.442695
    %v547 = vpow.pop %v546
    %v548 = vmul.f32 %v530, 1.442695
    %v549 = vpow.pop %v548
    %v550 = vmul.f32 %v531, 1.442695
    %v551 = vpow.pop %v550
    %v552 = vmul.f32 %v532, 1.442695
    %v553 = vpow.pop %v552
    %v554 = vmul.f32 %v533, 1.442695
    %v555 = vpow.pop %v554
    %v556 = vmul.f32 %v534, 1.442695
    %v557 = vpow.pop %v556
    %v558 = vmul.f32 %v535, 1.442695
    %v559 = vpow.pop %v558
    %v560 = vmul.f32 %v536, 1.442695
    %v561 = vpow.pop %v560
    %v562 = vmul.f32 %v537, 1.442695
    %v563 = vpow.pop %v562
    %v564 = vmul.f32 %v538, 1.442695
    %v565 = vpow.pop %v564
    %v566 = vmul.f32 %v539, 1.442695
    %v567 = vpow.pop %v566
    %v568 = vmul.f32 %v540, 1.442695
    %v569 = vpow.pop %v568
    %v570 = vmul.f32 %v541, 1.442695
    %v571 = vpow.pop %v570
    %v572 = vmul.f32 %v542, 1.442695
    %v573 = vpow.pop %v572
    %v574 = vmul.f32 %v543, 1.442695
    %v575 = vpow.pop %v574
    %576 = vadd.xlane.f32.xlu0 %v545
    %v577 = vpop.xlane.xlu0 %576
    %578 = vadd.xlane.f32.xlu0 %v547
    %v579 = vpop.xlane.xlu0 %578
    %580 = vadd.xlane.f32.xlu0 %v549
    %v581 = vpop.xlane.xlu0 %580
    %582 = vadd.xlane.f32.xlu0 %v551
    %v583 = vpop.xlane.xlu0 %582
    %584 = vadd.xlane.f32.xlu0 %v553
    %v585 = vpop.xlane.xlu0 %584
    %586 = vadd.xlane.f32.xlu0 %v555
    %v587 = vpop.xlane.xlu0 %586
    %588 = vadd.xlane.f32.xlu0 %v557
    %v589 = vpop.xlane.xlu0 %588
    %590 = vadd.xlane.f32.xlu0 %v559
    %v591 = vpop.xlane.xlu0 %590
    %592 = vadd.xlane.f32.xlu0 %v561
    %v593 = vpop.xlane.xlu0 %592
    %594 = vadd.xlane.f32.xlu0 %v563
    %v595 = vpop.xlane.xlu0 %594
    %596 = vadd.xlane.f32.xlu0 %v565
    %v597 = vpop.xlane.xlu0 %596
    %598 = vadd.xlane.f32.xlu0 %v567
    %v599 = vpop.xlane.xlu0 %598
    %600 = vadd.xlane.f32.xlu0 %v569
    %v601 = vpop.xlane.xlu0 %600
    %602 = vadd.xlane.f32.xlu0 %v571
    %v603 = vpop.xlane.xlu0 %602
    %604 = vadd.xlane.f32.xlu0 %v573
    %v605 = vpop.xlane.xlu0 %604
    %606 = vadd.xlane.f32.xlu0 %v575
    %v607 = vpop.xlane.xlu0 %606
    %v608 = vsub.f32 %v528, %v128
    %v609 = vsub.f32 %v529, %v129
    %v610 = vsub.f32 %v530, %v130
    %v611 = vsub.f32 %v531, %v131
    %v612 = vsub.f32 %v532, %v132
    %v613 = vsub.f32 %v533, %v133
    %v614 = vsub.f32 %v534, %v134
    %v615 = vsub.f32 %v535, %v135
    %v616 = vsub.f32 %v536, %v136
    %v617 = vsub.f32 %v537, %v137
    %v618 = vsub.f32 %v538, %v138
    %v619 = vsub.f32 %v539, %v139
    %v620 = vsub.f32 %v540, %v140
    %v621 = vsub.f32 %v541, %v141
    %v622 = vsub.f32 %v542, %v142
    %v623 = vsub.f32 %v543, %v143
    %v624 = vmul.f32 %v545, %v608
    %v625 = vmul.f32 %v547, %v609
    %v626 = vmul.f32 %v549, %v610
    %v627 = vmul.f32 %v551, %v611
    %v628 = vmul.f32 %v553, %v612
    %v629 = vmul.f32 %v555, %v613
    %v630 = vmul.f32 %v557, %v614
    %v631 = vmul.f32 %v559, %v615
    %v632 = vmul.f32 %v561, %v616
    %v633 = vmul.f32 %v563, %v617
    %v634 = vmul.f32 %v565, %v618
    %v635 = vmul.f32 %v567, %v619
    %v636 = vmul.f32 %v569, %v620
    %v637 = vmul.f32 %v571, %v621
    %v638 = vmul.f32 %v573, %v622
    %v639 = vmul.f32 %v575, %v623
    %640 = vadd.xlane.f32.xlu0 %v624
    %v641 = vpop.xlane.xlu0 %640
    %642 = vadd.xlane.f32.xlu0 %v625
    %v643 = vpop.xlane.xlu0 %642
    %644 = vadd.xlane.f32.xlu0 %v626
    %v645 = vpop.xlane.xlu0 %644
    %646 = vadd.xlane.f32.xlu0 %v627
    %v647 = vpop.xlane.xlu0 %646
    %648 = vadd.xlane.f32.xlu0 %v628
    %v649 = vpop.xlane.xlu0 %648
    %650 = vadd.xlane.f32.xlu0 %v629
    %v651 = vpop.xlane.xlu0 %650
    %652 = vadd.xlane.f32.xlu0 %v630
    %v653 = vpop.xlane.xlu0 %652
    %654 = vadd.xlane.f32.xlu0 %v631
    %v655 = vpop.xlane.xlu0 %654
    %656 = vadd.xlane.f32.xlu0 %v632
    %v657 = vpop.xlane.xlu0 %656
    %658 = vadd.xlane.f32.xlu0 %v633
    %v659 = vpop.xlane.xlu0 %658
    %660 = vadd.xlane.f32.xlu0 %v634
    %v661 = vpop.xlane.xlu0 %660
    %662 = vadd.xlane.f32.xlu0 %v635
    %v663 = vpop.xlane.xlu0 %662
    %664 = vadd.xlane.f32.xlu0 %v636
    %v665 = vpop.xlane.xlu0 %664
    %666 = vadd.xlane.f32.xlu0 %v637
    %v667 = vpop.xlane.xlu0 %666
    %668 = vadd.xlane.f32.xlu0 %v638
    %v669 = vpop.xlane.xlu0 %668
    %670 = vadd.xlane.f32.xlu0 %v639
    %v671 = vpop.xlane.xlu0 %670
    %v672 = vrcp.pop %v577
    %v673 = vrcp.pop %v579
    %v674 = vrcp.pop %v581
    %v675 = vrcp.pop %v583
    %v676 = vrcp.pop %v585
    %v677 = vrcp.pop %v587
    %v678 = vrcp.pop %v589
    %v679 = vrcp.pop %v591
    %v680 = vrcp.pop %v593
    %v681 = vrcp.pop %v595
    %v682 = vrcp.pop %v597
    %v683 = vrcp.pop %v599
    %v684 = vrcp.pop %v601
    %v685 = vrcp.pop %v603
    %v686 = vrcp.pop %v605
    %v687 = vrcp.pop %v607
    %v688 = vmul.f32 %v641, %v672
    %v689 = vmul.f32 %v643, %v673
    %v690 = vmul.f32 %v645, %v674
    %v691 = vmul.f32 %v647, %v675
    %v692 = vmul.f32 %v649, %v676
    %v693 = vmul.f32 %v651, %v677
    %v694 = vmul.f32 %v653, %v678
    %v695 = vmul.f32 %v655, %v679
    %v696 = vmul.f32 %v657, %v680
    %v697 = vmul.f32 %v659, %v681
    %v698 = vmul.f32 %v661, %v682
    %v699 = vmul.f32 %v663, %v683
    %v700 = vmul.f32 %v665, %v684
    %v701 = vmul.f32 %v667, %v685
    %v702 = vmul.f32 %v669, %v686
    %v703 = vmul.f32 %v671, %v687
    %v704 = vlog2.pop %v577
    %v705 = vmul.f32 %v704, 0.6931472
    %v706 = vlog2.pop %v579
    %v707 = vmul.f32 %v706, 0.6931472
    %v708 = vlog2.pop %v581
    %v709 = vmul.f32 %v708, 0.6931472
    %v710 = vlog2.pop %v583
    %v711 = vmul.f32 %v710, 0.6931472
    %v712 = vlog2.pop %v585
    %v713 = vmul.f32 %v712, 0.6931472
    %v714 = vlog2.pop %v587
    %v715 = vmul.f32 %v714, 0.6931472
    %v716 = vlog2.pop %v589
    %v717 = vmul.f32 %v716, 0.6931472
    %v718 = vlog2.pop %v591
    %v719 = vmul.f32 %v718, 0.6931472
    %v720 = vlog2.pop %v593
    %v721 = vmul.f32 %v720, 0.6931472
    %v722 = vlog2.pop %v595
    %v723 = vmul.f32 %v722, 0.6931472
    %v724 = vlog2.pop %v597
    %v725 = vmul.f32 %v724, 0.6931472
    %v726 = vlog2.pop %v599
    %v727 = vmul.f32 %v726, 0.6931472
    %v728 = vlog2.pop %v601
    %v729 = vmul.f32 %v728, 0.6931472
    %v730 = vlog2.pop %v603
    %v731 = vmul.f32 %v730, 0.6931472
    %v732 = vlog2.pop %v605
    %v733 = vmul.f32 %v732, 0.6931472
    %v734 = vlog2.pop %v607
    %v735 = vmul.f32 %v734, 0.6931472
    %v736 = vsub.f32 %v688, %v705
    %v737 = vsub.f32 %v689, %v707
    %v738 = vsub.f32 %v690, %v709
    %v739 = vsub.f32 %v691, %v711
    %v740 = vsub.f32 %v692, %v713
    %v741 = vsub.f32 %v693, %v715
    %v742 = vsub.f32 %v694, %v717
    %v743 = vsub.f32 %v695, %v719
    %v744 = vsub.f32 %v696, %v721
    %v745 = vsub.f32 %v697, %v723
    %v746 = vsub.f32 %v698, %v725
    %v747 = vsub.f32 %v699, %v727
    %v748 = vsub.f32 %v700, %v729
    %v749 = vsub.f32 %v701, %v731
    %v750 = vsub.f32 %v702, %v733
    %v751 = vsub.f32 %v703, %v735
    %s752 = scalar_lea.vmem %s1, %s35
    %v753 = vld [vmem:[%s752] sm:$0xff]
    %v754 = vld [vmem:[%s752 + $0x8] sm:$0xff]
    %v755 = vld [vmem:[%s752 + $0x10] sm:$0xff]
    %v756 = vld [vmem:[%s752 + $0x18] sm:$0xff]
    %v757 = vld [vmem:[%s752 + $0x20] sm:$0xff]
    %v758 = vld [vmem:[%s752 + $0x28] sm:$0xff]
    %v759 = vld [vmem:[%s752 + $0x30] sm:$0xff]
    %v760 = vld [vmem:[%s752 + $0x38] sm:$0xff]
    %v761 = vld [vmem:[%s752 + $0x40] sm:$0xff]
    %v762 = vld [vmem:[%s752 + $0x48] sm:$0xff]
    %v763 = vld [vmem:[%s752 + $0x50] sm:$0xff]
    %v764 = vld [vmem:[%s752 + $0x58] sm:$0xff]
    %v765 = vld [vmem:[%s752 + $0x60] sm:$0xff]
    %v766 = vld [vmem:[%s752 + $0x68] sm:$0xff]
    %v767 = vld [vmem:[%s752 + $0x70] sm:$0xff]
    %v768 = vld [vmem:[%s752 + $0x78] sm:$0xff]
    %v769 = vld [vmem:[%s0] sm:$0xff]
    %v770 = vld [vmem:[%s0 + $0x8] sm:$0xff]
    %v771 = vld [vmem:[%s0 + $0x10] sm:$0xff]
    %v772 = vld [vmem:[%s0 + $0x18] sm:$0xff]
    %v773 = vld [vmem:[%s0 + $0x20] sm:$0xff]
    %v774 = vld [vmem:[%s0 + $0x28] sm:$0xff]
    %v775 = vld [vmem:[%s0 + $0x30] sm:$0xff]
    %v776 = vld [vmem:[%s0 + $0x38] sm:$0xff]
    %v777 = vld [vmem:[%s0 + $0x40] sm:$0xff]
    %v778 = vld [vmem:[%s0 + $0x48] sm:$0xff]
    %v779 = vld [vmem:[%s0 + $0x50] sm:$0xff]
    %v780 = vld [vmem:[%s0 + $0x58] sm:$0xff]
    %v781 = vld [vmem:[%s0 + $0x60] sm:$0xff]
    %v782 = vld [vmem:[%s0 + $0x68] sm:$0xff]
    %v783 = vld [vmem:[%s0 + $0x70] sm:$0xff]
    %v784 = vld [vmem:[%s0 + $0x78] sm:$0xff]
    %785 = vmatprep.subr.mxu0 0.0
    %786 = vmatpush1.xpose.msra.mxu0 %v784
    %787 = vmatprep.subr.mxu0 0.0
    %788 = vmatpush1.xpose.msra.mxu0 %v783
    %789 = vmatprep.subr.mxu0 0.0
    %790 = vmatpush1.xpose.msra.mxu0 %v782
    %791 = vmatprep.subr.mxu0 0.0
    %792 = vmatpush1.xpose.msra.mxu0 %v781
    %793 = vmatprep.subr.mxu0 0.0
    %794 = vmatpush1.xpose.msra.mxu0 %v780
    %795 = vmatprep.subr.mxu0 0.0
    %796 = vmatpush1.xpose.msra.mxu0 %v779
    %797 = vmatprep.subr.mxu0 0.0
    %798 = vmatpush1.xpose.msra.mxu0 %v778
    %799 = vmatprep.subr.mxu0 0.0
    %800 = vmatpush1.xpose.msra.mxu0 %v777
    %801 = vmatprep.subr.mxu0 0.0
    %802 = vmatpush1.xpose.msra.mxu0 %v776
    %803 = vmatprep.subr.mxu0 0.0
    %804 = vmatpush1.xpose.msra.mxu0 %v775
    %805 = vmatprep.subr.mxu0 0.0
    %806 = vmatpush1.xpose.msra.mxu0 %v774
    %807 = vmatprep.subr.mxu0 0.0
    %808 = vmatpush1.xpose.msra.mxu0 %v773
    %809 = vmatprep.subr.mxu0 0.0
    %810 = vmatpush1.xpose.msra.mxu0 %v772
    %811 = vmatprep.subr.mxu0 0.0
    %812 = vmatpush1.xpose.msra.mxu0 %v771
    %813 = vmatprep.subr.mxu0 0.0
    %814 = vmatpush1.xpose.msra.mxu0 %v770
    %815 = vmatprep.subr.mxu0 0.0
    %816 = vmatpush1.xpose.msra.mxu0 %v769
    %817 = vmatprep.subr.mxu0 0.0
    %818 = vmatpush2.xpose.msra.mxu0 0.0
    %819 = vmatprep.subr.mxu0 0.0
    %820 = vmatpush2.xpose.msra.mxu0 0.0
    %821 = vmatprep.subr.mxu0 0.0
    %822 = vmatpush2.xpose.msra.mxu0 0.0
    %823 = vmatprep.subr.mxu0 0.0
    %824 = vmatpush2.xpose.msra.mxu0 0.0
    %825 = vmatprep.subr.mxu0 0.0
    %826 = vmatpush2.xpose.msra.mxu0 0.0
    %827 = vmatprep.subr.mxu0 0.0
    %828 = vmatpush2.xpose.msra.mxu0 0.0
    %829 = vmatprep.subr.mxu0 0.0
    %830 = vmatpush2.xpose.msra.mxu0 0.0
    %831 = vmatprep.subr.mxu0 0.0
    %832 = vmatpush2.xpose.msra.mxu0 0.0
    %833 = vmatprep.subr.mxu0 0.0
    %834 = vmatpush2.xpose.msra.mxu0 0.0
    %835 = vmatprep.subr.mxu0 0.0
    %836 = vmatpush2.xpose.msra.mxu0 0.0
    %837 = vmatprep.subr.mxu0 0.0
    %838 = vmatpush2.xpose.msra.mxu0 0.0
    %839 = vmatprep.subr.mxu0 0.0
    %840 = vmatpush2.xpose.msra.mxu0 0.0
    %841 = vmatprep.subr.mxu0 0.0
    %842 = vmatpush2.xpose.msra.mxu0 0.0
    %843 = vmatprep.subr.mxu0 0.0
    %844 = vmatpush2.xpose.msra.mxu0 0.0
    %845 = vmatprep.subr.mxu0 0.0
    %846 = vmatpush2.xpose.msra.mxu0 0.0
    %847 = vmatprep.subr.mxu0 0.0
    %848 = vmatpush2.xpose.msra.mxu0 0.0
    %849 = vmatprep.mubr.f32.mxu0 0.0
    %850 = vmatmul.mubr.f32.gmra.mxu0 %v753
    %v851 = vpop.f32.mrf.mxu0
    %v852 = vadd.f32 0.0, %v851
    %v853 = vpop.f32.mrf.mxu0
    %854 = vmatprep.mubr.f32.mxu0 0.0
    %855 = vmatmul.mubr.f32.gmra.mxu0 %v754
    %v856 = vpop.f32.mrf.mxu0
    %v857 = vadd.f32 0.0, %v856
    %v858 = vpop.f32.mrf.mxu0
    %859 = vmatprep.mubr.f32.mxu0 0.0
    %860 = vmatmul.mubr.f32.gmra.mxu0 %v755
    %v861 = vpop.f32.mrf.mxu0
    %v862 = vadd.f32 0.0, %v861
    %v863 = vpop.f32.mrf.mxu0
    %864 = vmatprep.mubr.f32.mxu0 0.0
    %865 = vmatmul.mubr.f32.gmra.mxu0 %v756
    %v866 = vpop.f32.mrf.mxu0
    %v867 = vadd.f32 0.0, %v866
    %v868 = vpop.f32.mrf.mxu0
    %869 = vmatprep.mubr.f32.mxu0 0.0
    %870 = vmatmul.mubr.f32.gmra.mxu0 %v757
    %v871 = vpop.f32.mrf.mxu0
    %v872 = vadd.f32 0.0, %v871
    %v873 = vpop.f32.mrf.mxu0
    %874 = vmatprep.mubr.f32.mxu0 0.0
    %875 = vmatmul.mubr.f32.gmra.mxu0 %v758
    %v876 = vpop.f32.mrf.mxu0
    %v877 = vadd.f32 0.0, %v876
    %v878 = vpop.f32.mrf.mxu0
    %879 = vmatprep.mubr.f32.mxu0 0.0
    %880 = vmatmul.mubr.f32.gmra.mxu0 %v759
    %v881 = vpop.f32.mrf.mxu0
    %v882 = vadd.f32 0.0, %v881
    %v883 = vpop.f32.mrf.mxu0
    %884 = vmatprep.mubr.f32.mxu0 0.0
    %885 = vmatmul.mubr.f32.gmra.mxu0 %v760
    %v886 = vpop.f32.mrf.mxu0
    %v887 = vadd.f32 0.0, %v886
    %v888 = vpop.f32.mrf.mxu0
    %889 = vmatprep.mubr.f32.mxu0 0.0
    %890 = vmatmul.mubr.f32.gmra.mxu0 %v761
    %v891 = vpop.f32.mrf.mxu0
    %v892 = vadd.f32 0.0, %v891
    %v893 = vpop.f32.mrf.mxu0
    %894 = vmatprep.mubr.f32.mxu0 0.0
    %895 = vmatmul.mubr.f32.gmra.mxu0 %v762
    %v896 = vpop.f32.mrf.mxu0
    %v897 = vadd.f32 0.0, %v896
    %v898 = vpop.f32.mrf.mxu0
    %899 = vmatprep.mubr.f32.mxu0 0.0
    %900 = vmatmul.mubr.f32.gmra.mxu0 %v763
    %v901 = vpop.f32.mrf.mxu0
    %v902 = vadd.f32 0.0, %v901
    %v903 = vpop.f32.mrf.mxu0
    %904 = vmatprep.mubr.f32.mxu0 0.0
    %905 = vmatmul.mubr.f32.gmra.mxu0 %v764
    %v906 = vpop.f32.mrf.mxu0
    %v907 = vadd.f32 0.0, %v906
    %v908 = vpop.f32.mrf.mxu0
    %909 = vmatprep.mubr.f32.mxu0 0.0
    %910 = vmatmul.mubr.f32.gmra.mxu0 %v765
    %v911 = vpop.f32.mrf.mxu0
    %v912 = vadd.f32 0.0, %v911
    %v913 = vpop.f32.mrf.mxu0
    %914 = vmatprep.mubr.f32.mxu0 0.0
    %915 = vmatmul.mubr.f32.gmra.mxu0 %v766
    %v916 = vpop.f32.mrf.mxu0
    %v917 = vadd.f32 0.0, %v916
    %v918 = vpop.f32.mrf.mxu0
    %919 = vmatprep.mubr.f32.mxu0 0.0
    %920 = vmatmul.mubr.f32.gmra.mxu0 %v767
    %v921 = vpop.f32.mrf.mxu0
    %v922 = vadd.f32 0.0, %v921
    %v923 = vpop.f32.mrf.mxu0
    %924 = vmatprep.mubr.f32.mxu0 0.0
    %925 = vmatmul.mubr.f32.gmra.mxu0 %v768
    %v926 = vpop.f32.mrf.mxu0
    %v927 = vadd.f32 0.0, %v926
    %v928 = vpop.f32.mrf.mxu0
    %929 = vdwg.mxu0
    %v930 = vld [vmem:[%s6] sm:$0x1]
    %v932 = vlaneseq
    %v933 = vshrl.u32 %v932, 7
    %v934 = vsub.s32 0, %v933
    %v935 = vrot.slane %v930, %v934
    %v937 = vmul.f32 %v852, %v935
    %v938 = vmul.f32 %v857, %v935
    %v939 = vmul.f32 %v862, %v935
    %v940 = vmul.f32 %v867, %v935
    %v941 = vmul.f32 %v872, %v935
    %v942 = vmul.f32 %v877, %v935
    %v943 = vmul.f32 %v882, %v935
    %v944 = vmul.f32 %v887, %v935
    %v945 = vmul.f32 %v892, %v935
    %v946 = vmul.f32 %v897, %v935
    %v947 = vmul.f32 %v902, %v935
    %v948 = vmul.f32 %v907, %v935
    %v949 = vmul.f32 %v912, %v935
    %v950 = vmul.f32 %v917, %v935
    %v951 = vmul.f32 %v922, %v935
    %v952 = vmul.f32 %v927, %v935
    %v953 = vadd.f32 %v937, %v478
    %v954 = vadd.f32 %v938, %v478
    %v955 = vadd.f32 %v939, %v478
    %v956 = vadd.f32 %v940, %v478
    %v957 = vadd.f32 %v941, %v478
    %v958 = vadd.f32 %v942, %v478
    %v959 = vadd.f32 %v943, %v478
    %v960 = vadd.f32 %v944, %v478
    %v961 = vadd.f32 %v945, %v478
    %v962 = vadd.f32 %v946, %v478
    %v963 = vadd.f32 %v947, %v478
    %v964 = vadd.f32 %v948, %v478
    %v965 = vadd.f32 %v949, %v478
    %v966 = vadd.f32 %v950, %v478
    %v967 = vadd.f32 %v951, %v478
    %v968 = vadd.f32 %v952, %v478
    %969 = vmax.xlane.f32.xlu0 %v953
    %v970 = vpop.xlane.xlu0 %969
    %971 = vmax.xlane.f32.xlu0 %v954
    %v972 = vpop.xlane.xlu0 %971
    %973 = vmax.xlane.f32.xlu0 %v955
    %v974 = vpop.xlane.xlu0 %973
    %975 = vmax.xlane.f32.xlu0 %v956
    %v976 = vpop.xlane.xlu0 %975
    %977 = vmax.xlane.f32.xlu0 %v957
    %v978 = vpop.xlane.xlu0 %977
    %979 = vmax.xlane.f32.xlu0 %v958
    %v980 = vpop.xlane.xlu0 %979
    %981 = vmax.xlane.f32.xlu0 %v959
    %v982 = vpop.xlane.xlu0 %981
    %983 = vmax.xlane.f32.xlu0 %v960
    %v984 = vpop.xlane.xlu0 %983
    %985 = vmax.xlane.f32.xlu0 %v961
    %v986 = vpop.xlane.xlu0 %985
    %987 = vmax.xlane.f32.xlu0 %v962
    %v988 = vpop.xlane.xlu0 %987
    %989 = vmax.xlane.f32.xlu0 %v963
    %v990 = vpop.xlane.xlu0 %989
    %991 = vmax.xlane.f32.xlu0 %v964
    %v992 = vpop.xlane.xlu0 %991
    %993 = vmax.xlane.f32.xlu0 %v965
    %v994 = vpop.xlane.xlu0 %993
    %995 = vmax.xlane.f32.xlu0 %v966
    %v996 = vpop.xlane.xlu0 %995
    %997 = vmax.xlane.f32.xlu0 %v967
    %v998 = vpop.xlane.xlu0 %997
    %999 = vmax.xlane.f32.xlu0 %v968
    %v1000 = vpop.xlane.xlu0 %999
    %v1001 = vsub.f32 %v953, %v970
    %v1002 = vsub.f32 %v954, %v972
    %v1003 = vsub.f32 %v955, %v974
    %v1004 = vsub.f32 %v956, %v976
    %v1005 = vsub.f32 %v957, %v978
    %v1006 = vsub.f32 %v958, %v980
    %v1007 = vsub.f32 %v959, %v982
    %v1008 = vsub.f32 %v960, %v984
    %v1009 = vsub.f32 %v961, %v986
    %v1010 = vsub.f32 %v962, %v988
    %v1011 = vsub.f32 %v963, %v990
    %v1012 = vsub.f32 %v964, %v992
    %v1013 = vsub.f32 %v965, %v994
    %v1014 = vsub.f32 %v966, %v996
    %v1015 = vsub.f32 %v967, %v998
    %v1016 = vsub.f32 %v968, %v1000
    %v1017 = vmul.f32 %v1001, 1.442695
    %v1018 = vpow.pop %v1017
    %v1019 = vmul.f32 %v1002, 1.442695
    %v1020 = vpow.pop %v1019
    %v1021 = vmul.f32 %v1003, 1.442695
    %v1022 = vpow.pop %v1021
    %v1023 = vmul.f32 %v1004, 1.442695
    %v1024 = vpow.pop %v1023
    %v1025 = vmul.f32 %v1005, 1.442695
    %v1026 = vpow.pop %v1025
    %v1027 = vmul.f32 %v1006, 1.442695
    %v1028 = vpow.pop %v1027
    %v1029 = vmul.f32 %v1007, 1.442695
    %v1030 = vpow.pop %v1029
    %v1031 = vmul.f32 %v1008, 1.442695
    %v1032 = vpow.pop %v1031
    %v1033 = vmul.f32 %v1009, 1.442695
    %v1034 = vpow.pop %v1033
    %v1035 = vmul.f32 %v1010, 1.442695
    %v1036 = vpow.pop %v1035
    %v1037 = vmul.f32 %v1011, 1.442695
    %v1038 = vpow.pop %v1037
    %v1039 = vmul.f32 %v1012, 1.442695
    %v1040 = vpow.pop %v1039
    %v1041 = vmul.f32 %v1013, 1.442695
    %v1042 = vpow.pop %v1041
    %v1043 = vmul.f32 %v1014, 1.442695
    %v1044 = vpow.pop %v1043
    %v1045 = vmul.f32 %v1015, 1.442695
    %v1046 = vpow.pop %v1045
    %v1047 = vmul.f32 %v1016, 1.442695
    %v1048 = vpow.pop %v1047
    %1049 = vadd.xlane.f32.xlu0 %v1018
    %v1050 = vpop.xlane.xlu0 %1049
    %1051 = vadd.xlane.f32.xlu0 %v1020
    %v1052 = vpop.xlane.xlu0 %1051
    %1053 = vadd.xlane.f32.xlu0 %v1022
    %v1054 = vpop.xlane.xlu0 %1053
    %1055 = vadd.xlane.f32.xlu0 %v1024
    %v1056 = vpop.xlane.xlu0 %1055
    %1057 = vadd.xlane.f32.xlu0 %v1026
    %v1058 = vpop.xlane.xlu0 %1057
    %1059 = vadd.xlane.f32.xlu0 %v1028
    %v1060 = vpop.xlane.xlu0 %1059
    %1061 = vadd.xlane.f32.xlu0 %v1030
    %v1062 = vpop.xlane.xlu0 %1061
    %1063 = vadd.xlane.f32.xlu0 %v1032
    %v1064 = vpop.xlane.xlu0 %1063
    %1065 = vadd.xlane.f32.xlu0 %v1034
    %v1066 = vpop.xlane.xlu0 %1065
    %1067 = vadd.xlane.f32.xlu0 %v1036
    %v1068 = vpop.xlane.xlu0 %1067
    %1069 = vadd.xlane.f32.xlu0 %v1038
    %v1070 = vpop.xlane.xlu0 %1069
    %1071 = vadd.xlane.f32.xlu0 %v1040
    %v1072 = vpop.xlane.xlu0 %1071
    %1073 = vadd.xlane.f32.xlu0 %v1042
    %v1074 = vpop.xlane.xlu0 %1073
    %1075 = vadd.xlane.f32.xlu0 %v1044
    %v1076 = vpop.xlane.xlu0 %1075
    %1077 = vadd.xlane.f32.xlu0 %v1046
    %v1078 = vpop.xlane.xlu0 %1077
    %1079 = vadd.xlane.f32.xlu0 %v1048
    %v1080 = vpop.xlane.xlu0 %1079
    %v1081 = vsub.f32 %v1001, %v128
    %v1082 = vsub.f32 %v1002, %v129
    %v1083 = vsub.f32 %v1003, %v130
    %v1084 = vsub.f32 %v1004, %v131
    %v1085 = vsub.f32 %v1005, %v132
    %v1086 = vsub.f32 %v1006, %v133
    %v1087 = vsub.f32 %v1007, %v134
    %v1088 = vsub.f32 %v1008, %v135
    %v1089 = vsub.f32 %v1009, %v136
    %v1090 = vsub.f32 %v1010, %v137
    %v1091 = vsub.f32 %v1011, %v138
    %v1092 = vsub.f32 %v1012, %v139
    %v1093 = vsub.f32 %v1013, %v140
    %v1094 = vsub.f32 %v1014, %v141
    %v1095 = vsub.f32 %v1015, %v142
    %v1096 = vsub.f32 %v1016, %v143
    %v1097 = vmul.f32 %v1018, %v1081
    %v1098 = vmul.f32 %v1020, %v1082
    %v1099 = vmul.f32 %v1022, %v1083
    %v1100 = vmul.f32 %v1024, %v1084
    %v1101 = vmul.f32 %v1026, %v1085
    %v1102 = vmul.f32 %v1028, %v1086
    %v1103 = vmul.f32 %v1030, %v1087
    %v1104 = vmul.f32 %v1032, %v1088
    %v1105 = vmul.f32 %v1034, %v1089
    %v1106 = vmul.f32 %v1036, %v1090
    %v1107 = vmul.f32 %v1038, %v1091
    %v1108 = vmul.f32 %v1040, %v1092
    %v1109 = vmul.f32 %v1042, %v1093
    %v1110 = vmul.f32 %v1044, %v1094
    %v1111 = vmul.f32 %v1046, %v1095
    %v1112 = vmul.f32 %v1048, %v1096
    %1113 = vadd.xlane.f32.xlu0 %v1097
    %v1114 = vpop.xlane.xlu0 %1113
    %1115 = vadd.xlane.f32.xlu0 %v1098
    %v1116 = vpop.xlane.xlu0 %1115
    %1117 = vadd.xlane.f32.xlu0 %v1099
    %v1118 = vpop.xlane.xlu0 %1117
    %1119 = vadd.xlane.f32.xlu0 %v1100
    %v1120 = vpop.xlane.xlu0 %1119
    %1121 = vadd.xlane.f32.xlu0 %v1101
    %v1122 = vpop.xlane.xlu0 %1121
    %1123 = vadd.xlane.f32.xlu0 %v1102
    %v1124 = vpop.xlane.xlu0 %1123
    %1125 = vadd.xlane.f32.xlu0 %v1103
    %v1126 = vpop.xlane.xlu0 %1125
    %1127 = vadd.xlane.f32.xlu0 %v1104
    %v1128 = vpop.xlane.xlu0 %1127
    %1129 = vadd.xlane.f32.xlu0 %v1105
    %v1130 = vpop.xlane.xlu0 %1129
    %1131 = vadd.xlane.f32.xlu0 %v1106
    %v1132 = vpop.xlane.xlu0 %1131
    %1133 = vadd.xlane.f32.xlu0 %v1107
    %v1134 = vpop.xlane.xlu0 %1133
    %1135 = vadd.xlane.f32.xlu0 %v1108
    %v1136 = vpop.xlane.xlu0 %1135
    %1137 = vadd.xlane.f32.xlu0 %v1109
    %v1138 = vpop.xlane.xlu0 %1137
    %1139 = vadd.xlane.f32.xlu0 %v1110
    %v1140 = vpop.xlane.xlu0 %1139
    %1141 = vadd.xlane.f32.xlu0 %v1111
    %v1142 = vpop.xlane.xlu0 %1141
    %1143 = vadd.xlane.f32.xlu0 %v1112
    %v1144 = vpop.xlane.xlu0 %1143
    %v1145 = vrcp.pop %v1050
    %v1146 = vrcp.pop %v1052
    %v1147 = vrcp.pop %v1054
    %v1148 = vrcp.pop %v1056
    %v1149 = vrcp.pop %v1058
    %v1150 = vrcp.pop %v1060
    %v1151 = vrcp.pop %v1062
    %v1152 = vrcp.pop %v1064
    %v1153 = vrcp.pop %v1066
    %v1154 = vrcp.pop %v1068
    %v1155 = vrcp.pop %v1070
    %v1156 = vrcp.pop %v1072
    %v1157 = vrcp.pop %v1074
    %v1158 = vrcp.pop %v1076
    %v1159 = vrcp.pop %v1078
    %v1160 = vrcp.pop %v1080
    %v1161 = vmul.f32 %v1114, %v1145
    %v1162 = vmul.f32 %v1116, %v1146
    %v1163 = vmul.f32 %v1118, %v1147
    %v1164 = vmul.f32 %v1120, %v1148
    %v1165 = vmul.f32 %v1122, %v1149
    %v1166 = vmul.f32 %v1124, %v1150
    %v1167 = vmul.f32 %v1126, %v1151
    %v1168 = vmul.f32 %v1128, %v1152
    %v1169 = vmul.f32 %v1130, %v1153
    %v1170 = vmul.f32 %v1132, %v1154
    %v1171 = vmul.f32 %v1134, %v1155
    %v1172 = vmul.f32 %v1136, %v1156
    %v1173 = vmul.f32 %v1138, %v1157
    %v1174 = vmul.f32 %v1140, %v1158
    %v1175 = vmul.f32 %v1142, %v1159
    %v1176 = vmul.f32 %v1144, %v1160
    %v1177 = vlog2.pop %v1050
    %v1178 = vmul.f32 %v1177, 0.6931472
    %v1179 = vlog2.pop %v1052
    %v1180 = vmul.f32 %v1179, 0.6931472
    %v1181 = vlog2.pop %v1054
    %v1182 = vmul.f32 %v1181, 0.6931472
    %v1183 = vlog2.pop %v1056
    %v1184 = vmul.f32 %v1183, 0.6931472
    %v1185 = vlog2.pop %v1058
    %v1186 = vmul.f32 %v1185, 0.6931472
    %v1187 = vlog2.pop %v1060
    %v1188 = vmul.f32 %v1187, 0.6931472
    %v1189 = vlog2.pop %v1062
    %v1190 = vmul.f32 %v1189, 0.6931472
    %v1191 = vlog2.pop %v1064
    %v1192 = vmul.f32 %v1191, 0.6931472
    %v1193 = vlog2.pop %v1066
    %v1194 = vmul.f32 %v1193, 0.6931472
    %v1195 = vlog2.pop %v1068
    %v1196 = vmul.f32 %v1195, 0.6931472
    %v1197 = vlog2.pop %v1070
    %v1198 = vmul.f32 %v1197, 0.6931472
    %v1199 = vlog2.pop %v1072
    %v1200 = vmul.f32 %v1199, 0.6931472
    %v1201 = vlog2.pop %v1074
    %v1202 = vmul.f32 %v1201, 0.6931472
    %v1203 = vlog2.pop %v1076
    %v1204 = vmul.f32 %v1203, 0.6931472
    %v1205 = vlog2.pop %v1078
    %v1206 = vmul.f32 %v1205, 0.6931472
    %v1207 = vlog2.pop %v1080
    %v1208 = vmul.f32 %v1207, 0.6931472
    %v1209 = vsub.f32 %v1161, %v1178
    %v1210 = vsub.f32 %v1162, %v1180
    %v1211 = vsub.f32 %v1163, %v1182
    %v1212 = vsub.f32 %v1164, %v1184
    %v1213 = vsub.f32 %v1165, %v1186
    %v1214 = vsub.f32 %v1166, %v1188
    %v1215 = vsub.f32 %v1167, %v1190
    %v1216 = vsub.f32 %v1168, %v1192
    %v1217 = vsub.f32 %v1169, %v1194
    %v1218 = vsub.f32 %v1170, %v1196
    %v1219 = vsub.f32 %v1171, %v1198
    %v1220 = vsub.f32 %v1172, %v1200
    %v1221 = vsub.f32 %v1173, %v1202
    %v1222 = vsub.f32 %v1174, %v1204
    %v1223 = vsub.f32 %v1175, %v1206
    %v1224 = vsub.f32 %v1176, %v1208
    %v1225 = vadd.f32 %v736, %v1209
    %v1226 = vadd.f32 %v737, %v1210
    %v1227 = vadd.f32 %v738, %v1211
    %v1228 = vadd.f32 %v739, %v1212
    %v1229 = vadd.f32 %v740, %v1213
    %v1230 = vadd.f32 %v741, %v1214
    %v1231 = vadd.f32 %v742, %v1215
    %v1232 = vadd.f32 %v743, %v1216
    %v1233 = vadd.f32 %v744, %v1217
    %v1234 = vadd.f32 %v745, %v1218
    %v1235 = vadd.f32 %v746, %v1219
    %v1236 = vadd.f32 %v747, %v1220
    %v1237 = vadd.f32 %v748, %v1221
    %v1238 = vadd.f32 %v749, %v1222
    %v1239 = vadd.f32 %v750, %v1223
    %v1240 = vadd.f32 %v751, %v1224
    %vm1241 = vcmask 7168
    %1242 = vst.msk [vmem:[%s10] sm:$0xff] %vm1241, %v1225
    %1243 = vst.msk [vmem:[%s10 + $0x8] sm:$0xff] %vm1241, %v1226
    %1244 = vst.msk [vmem:[%s10 + $0x10] sm:$0xff] %vm1241, %v1227
    %1245 = vst.msk [vmem:[%s10 + $0x18] sm:$0xff] %vm1241, %v1228
    %1246 = vst.msk [vmem:[%s10 + $0x20] sm:$0xff] %vm1241, %v1229
    %1247 = vst.msk [vmem:[%s10 + $0x28] sm:$0xff] %vm1241, %v1230
    %1248 = vst.msk [vmem:[%s10 + $0x30] sm:$0xff] %vm1241, %v1231
    %1249 = vst.msk [vmem:[%s10 + $0x38] sm:$0xff] %vm1241, %v1232
    %1250 = vst.msk [vmem:[%s10 + $0x40] sm:$0xff] %vm1241, %v1233
    %1251 = vst.msk [vmem:[%s10 + $0x48] sm:$0xff] %vm1241, %v1234
    %1252 = vst.msk [vmem:[%s10 + $0x50] sm:$0xff] %vm1241, %v1235
    %1253 = vst.msk [vmem:[%s10 + $0x58] sm:$0xff] %vm1241, %v1236
    %1254 = vst.msk [vmem:[%s10 + $0x60] sm:$0xff] %vm1241, %v1237
    %1255 = vst.msk [vmem:[%s10 + $0x68] sm:$0xff] %vm1241, %v1238
    %1256 = vst.msk [vmem:[%s10 + $0x70] sm:$0xff] %vm1241, %v1239
    %1257 = vst.msk [vmem:[%s10 + $0x78] sm:$0xff] %vm1241, %v1240
    // Predicated region
    $region38: #{tpu_custom_call.1} parent=1 // pred_check
      _
    $region39: #{tpu_custom_call.1} parent=1 // pred_check_branch
      %1259 = sbr.rel (0) target = $region41
    $region40: #{tpu_custom_call.1} parent=1 // pred_region
      %s1261 = ssub.s32 2048, 2048
      %1262 = vsyncadd [#allocation3], %s1261
      %s1263 = sshll.u32 [#allocation2], 4
      %s1264 = int_to_ptr.vmem [resolvable:$true] %s1263
      %1269 = dma.vmem_to_hbm [thread:$0]  %s1264, 2048, %s9, [#allocation3], 128, 128, 8
    $region41: #{tpu_custom_call.1} parent=1 // pred_fallthru
      _
    // Predicated region
    $region42: #{tpu_custom_call.1} parent=1 // pred_check
      _
    $region43: #{tpu_custom_call.1} parent=1 // pred_check_branch
      %1271 = sbr.rel (0) target = $region45
    $region44: #{tpu_custom_call.1} parent=1 // pred_region
      _
    $region45: #{tpu_custom_call.1} parent=1 // pred_fallthru
      _
    // Predicated region
    $region46: #{tpu_custom_call.1} parent=1 // pred_check
      _
    $region47: #{tpu_custom_call.1} parent=1 // pred_check_branch
      %1273 = sbr.rel (0) target = $region49
    $region48: #{tpu_custom_call.1} parent=1 // pred_region
      %1274 = dma.done [#allocation3], 2048
    $region49: #{tpu_custom_call.1} parent=1 // pred_fallthru
      _
    // Predicated region
    $region50: #{tpu_custom_call.1} parent=1 // pred_check
      _
    $region51: #{tpu_custom_call.1} parent=1 // pred_check_branch
      %1276 = sbr.rel (0) target = $region53
    $region52: #{tpu_custom_call.1} parent=1 // pred_region
      _
    $region53: #{tpu_custom_call.1} parent=1 // pred_fallthru
      _
    %1277 = vsyncpa [#allocation3], 1

// kernel: tpu_custom_call.1
$region0: #{tpu_custom_call.1}
  #allocation0 [shape = 'u32[]', space=smem, size = 0x4, offset = 0x4, fixed_abs, tag = 'smem constant byte address 0x4 - core index']
  #allocation1 [shape = 'u32[144,128]{1,0:T(1,128)}', space=vmem, size = 0x12000, scoped, tag = 'internal scratch']
  %s0 = inlined_call_operand.vmem [shape: f32[128,128], index: 0, kind: input, shape index: {}]
  %s1 = inlined_call_operand.vmem [shape: f32[128,128], index: 1, kind: input, shape index: {}]
  %s2 = inlined_call_operand.vmem [shape: s32[128,1], index: 2, kind: input, shape index: {}]
  %s3 = inlined_call_operand.vmem [shape: s32[1,128], index: 3, kind: input, shape index: {}]
  %s4 = inlined_call_operand.vmem [shape: f32[1,128], index: 4, kind: input, shape index: {}]
  %s5 = inlined_call_operand.vmem [shape: f32[128,1], index: 5, kind: input, shape index: {}]
  %s6 = inlined_call_operand.vmem [shape: f32[1,128], index: 6, kind: input, shape index: {}]
  %s7 = inlined_call_operand.vmem [shape: f32[1,128], index: 7, kind: input, shape index: {}]
  %s8 = inlined_call_operand.vmem [shape: f32[1,128], index: 8, kind: input, shape index: {}]
  %s9 = inlined_call_operand.hbm [shape: f32[128,128], index: 9, kind: output, shape index: {0}]
  %s10 = inlined_call_operand.vmem [shape: f32[128,1], index: 10, kind: output, shape index: {1}]
  %11 = xla_tuple %s9, %s10
  %s12 = sld [smem:[#allocation0]]
  $region54: #{tpu_custom_call.1} parent=0
    _
  %s14 = ssub.s32 1, %s12
  %s15 = scalar_select 0, %s14, %s12
  $region1: #{tpu_custom_call.1} parent=0
    #allocation2 [shape = 'u8[65536]{0}', space=vmem, size = 0x10000, scoped, tag = 'output window, operand 0, single buffered']
    #allocation3 [shape = 's32[1]{0}', space=sflag, size = 0x4, scoped, tag = 'scoped memory for tpu_custom_call.1']
    %16 = vsyncpa [#allocation3], 0
    // Predicated region
    $region2: #{tpu_custom_call.1} parent=1 // pred_check
      _
    $region3: #{tpu_custom_call.1} parent=1 // pred_check_branch
      %18 = sbr.rel (0) target = $region5
    $region4: #{tpu_custom_call.1} parent=1 // pred_region
      _
    $region5: #{tpu_custom_call.1} parent=1 // pred_fallthru
      _
    // Predicated region
    $region6: #{tpu_custom_call.1} parent=1 // pred_check
      _
    $region7: #{tpu_custom_call.1} parent=1 // pred_check_branch
      %20 = sbr.rel (0) target = $region9
    $region8: #{tpu_custom_call.1} parent=1 // pred_region
      _
    $region9: #{tpu_custom_call.1} parent=1 // pred_fallthru
      _
    // Predicated region
    $region10: #{tpu_custom_call.1} parent=1 // pred_check
      _
    $region11: #{tpu_custom_call.1} parent=1 // pred_check_branch
      %22 = sbr.rel (0) target = $region13
    $region12: #{tpu_custom_call.1} parent=1 // pred_region
      _
    $region13: #{tpu_custom_call.1} parent=1 // pred_fallthru
      _
    // Predicated region
    $region14: #{tpu_custom_call.1} parent=1 // pred_check
      _
    $region15: #{tpu_custom_call.1} parent=1 // pred_check_branch
      %24 = sbr.rel (0) target = $region17
    $region16: #{tpu_custom_call.1} parent=1 // pred_region
      _
    $region17: #{tpu_custom_call.1} parent=1 // pred_fallthru
      _
    // Predicated region
    $region18: #{tpu_custom_call.1} parent=1 // pred_check
      _
    $region19: #{tpu_custom_call.1} parent=1 // pred_check_branch
      %26 = sbr.rel (0) target = $region21
    $region20: #{tpu_custom_call.1} parent=1 // pred_region
      _
    $region21: #{tpu_custom_call.1} parent=1 // pred_fallthru
      _
    // Predicated region
    $region22: #{tpu_custom_call.1} parent=1 // pred_check
      _
    $region23: #{tpu_custom_call.1} parent=1 // pred_check_branch
      %28 = sbr.rel (0) target = $region25
    $region24: #{tpu_custom_call.1} parent=1 // pred_region
      _
    $region25: #{tpu_custom_call.1} parent=1 // pred_fallthru
      _
    // Predicated region
    $region26: #{tpu_custom_call.1} parent=1 // pred_check
      _
    $region27: #{tpu_custom_call.1} parent=1 // pred_check_branch
      %30 = sbr.rel (0) target = $region29
    $region28: #{tpu_custom_call.1} parent=1 // pred_region
      _
    $region29: #{tpu_custom_call.1} parent=1 // pred_fallthru
      _
    // Predicated region
    $region30: #{tpu_custom_call.1} parent=1 // pred_check
      _
    $region31: #{tpu_custom_call.1} parent=1 // pred_check_branch
      %32 = sbr.rel (0) target = $region33
    $region32: #{tpu_custom_call.1} parent=1 // pred_region
      _
    $region33: #{tpu_custom_call.1} parent=1 // pred_fallthru
      _
    // Predicated region
    $region34: #{tpu_custom_call.1} parent=1 // pred_check
      _
    $region35: #{tpu_custom_call.1} parent=1 // pred_check_branch
      %34 = sbr.rel (0) target = $region37
    $region36: #{tpu_custom_call.1} parent=1 // pred_region
      _
    $region37: #{tpu_custom_call.1} parent=1 // pred_fallthru
      _
    %s35 = smul.u32 0, 128
    %v36 = vld [vmem:[%s2] sm:$0xff]
    %v37 = vld [vmem:[%s2 + $0x8] sm:$0xff]
    %v38 = vld [vmem:[%s2 + $0x10] sm:$0xff]
    %v39 = vld [vmem:[%s2 + $0x18] sm:$0xff]
    %v40 = vld [vmem:[%s2 + $0x20] sm:$0xff]
    %v41 = vld [vmem:[%s2 + $0x28] sm:$0xff]
    %v42 = vld [vmem:[%s2 + $0x30] sm:$0xff]
    %v43 = vld [vmem:[%s2 + $0x38] sm:$0xff]
    %v44 = vld [vmem:[%s2 + $0x40] sm:$0xff]
    %v45 = vld [vmem:[%s2 + $0x48] sm:$0xff]
    %v46 = vld [vmem:[%s2 + $0x50] sm:$0xff]
    %v47 = vld [vmem:[%s2 + $0x58] sm:$0xff]
    %v48 = vld [vmem:[%s2 + $0x60] sm:$0xff]
    %v49 = vld [vmem:[%s2 + $0x68] sm:$0xff]
    %v50 = vld [vmem:[%s2 + $0x70] sm:$0xff]
    %v51 = vld [vmem:[%s2 + $0x78] sm:$0xff]
    %v52 = vld [vmem:[%s3] sm:$0x1]
    %53 = vset.pattern.permute.xlu0 0
    %54 = vperm.xlu0 %53, %v36
    %v55 = vpop.permute.xlu0 %54
    %56 = vset.pattern.permute.xlu0 0
    %57 = vperm.xlu0 %56, %v37
    %v58 = vpop.permute.xlu0 %57
    %59 = vset.pattern.permute.xlu0 0
    %60 = vperm.xlu0 %59, %v38
    %v61 = vpop.permute.xlu0 %60
    %62 = vset.pattern.permute.xlu0 0
    %63 = vperm.xlu0 %62, %v39
    %v64 = vpop.permute.xlu0 %63
    %65 = vset.pattern.permute.xlu0 0
    %66 = vperm.xlu0 %65, %v40
    %v67 = vpop.permute.xlu0 %66
    %68 = vset.pattern.permute.xlu0 0
    %69 = vperm.xlu0 %68, %v41
    %v70 = vpop.permute.xlu0 %69
    %71 = vset.pattern.permute.xlu0 0
    %72 = vperm.xlu0 %71, %v42
    %v73 = vpop.permute.xlu0 %72
    %74 = vset.pattern.permute.xlu0 0
    %75 = vperm.xlu0 %74, %v43
    %v76 = vpop.permute.xlu0 %75
    %77 = vset.pattern.permute.xlu0 0
    %78 = vperm.xlu0 %77, %v44
    %v79 = vpop.permute.xlu0 %78
    %80 = vset.pattern.permute.xlu0 0
    %81 = vperm.xlu0 %80, %v45
    %v82 = vpop.permute.xlu0 %81
    %83 = vset.pattern.permute.xlu0 0
    %84 = vperm.xlu0 %83, %v46
    %v85 = vpop.permute.xlu0 %84
    %86 = vset.pattern.permute.xlu0 0
    %87 = vperm.xlu0 %86, %v47
    %v88 = vpop.permute.xlu0 %87
    %89 = vset.pattern.permute.xlu0 0
    %90 = vperm.xlu0 %89, %v48
    %v91 = vpop.permute.xlu0 %90
    %92 = vset.pattern.permute.xlu0 0
    %93 = vperm.xlu0 %92, %v49
    %v94 = vpop.permute.xlu0 %93
    %95 = vset.pattern.permute.xlu0 0
    %96 = vperm.xlu0 %95, %v50
    %v97 = vpop.permute.xlu0 %96
    %98 = vset.pattern.permute.xlu0 0
    %99 = vperm.xlu0 %98, %v51
    %v100 = vpop.permute.xlu0 %99
    %v101 = vlaneseq
    %v102 = vshrl.u32 %v101, 7
    %v103 = vsub.s32 0, %v102
    %v104 = vrot.slane %v52, %v103
    %vm105 = vcmp.eq.s32.totalorder %v55, %v104
    %vm106 = vcmp.eq.s32.totalorder %v58, %v104
    %vm107 = vcmp.eq.s32.totalorder %v61, %v104
    %vm108 = vcmp.eq.s32.totalorder %v64, %v104
    %vm109 = vcmp.eq.s32.totalorder %v67, %v104
    %vm110 = vcmp.eq.s32.totalorder %v70, %v104
    %vm111 = vcmp.eq.s32.totalorder %v73, %v104
    %vm112 = vcmp.eq.s32.totalorder %v76, %v104
    %vm113 = vcmp.eq.s32.totalorder %v79, %v104
    %vm114 = vcmp.eq.s32.totalorder %v82, %v104
    %vm115 = vcmp.eq.s32.totalorder %v85, %v104
    %vm116 = vcmp.eq.s32.totalorder %v88, %v104
    %vm117 = vcmp.eq.s32.totalorder %v91, %v104
    %vm118 = vcmp.eq.s32.totalorder %v94, %v104
    %vm119 = vcmp.eq.s32.totalorder %v97, %v104
    %vm120 = vcmp.eq.s32.totalorder %v100, %v104
    %v121 = vld [vmem:[%s4] sm:$0x1]
    %v123 = vlaneseq
    %v124 = vshrl.u32 %v123, 7
    %v125 = vsub.s32 0, %v124
    %v126 = vrot.slane %v121, %v125
    %v128 = vsel %vm105, %v126, -18.420681
    %v129 = vsel %vm106, %v126, -18.420681
    %v130 = vsel %vm107, %v126, -18.420681
    %v131 = vsel %vm108, %v126, -18.420681
    %v132 = vsel %vm109, %v126, -18.420681
    %v133 = vsel %vm110, %v126, -18.420681
    %v134 = vsel %vm111, %v126, -18.420681
    %v135 = vsel %vm112, %v126, -18.420681
    %v136 = vsel %vm113, %v126, -18.420681
    %v137 = vsel %vm114, %v126, -18.420681
    %v138 = vsel %vm115, %v126, -18.420681
    %v139 = vsel %vm116, %v126, -18.420681
    %v140 = vsel %vm117, %v126, -18.420681
    %v141 = vsel %vm118, %v126, -18.420681
    %v142 = vsel %vm119, %v126, -18.420681
    %v143 = vsel %vm120, %v126, -18.420681
    %v144 = vld [vmem:[%s8] sm:$0x1]
    %s145 = scalar_lea.vmem %s0, %s35
    %v146 = vld [vmem:[%s145] sm:$0xff]
    %v147 = vld [vmem:[%s145 + $0x8] sm:$0xff]
    %v148 = vld [vmem:[%s145 + $0x10] sm:$0xff]
    %v149 = vld [vmem:[%s145 + $0x18] sm:$0xff]
    %v150 = vld [vmem:[%s145 + $0x20] sm:$0xff]
    %v151 = vld [vmem:[%s145 + $0x28] sm:$0xff]
    %v152 = vld [vmem:[%s145 + $0x30] sm:$0xff]
    %v153 = vld [vmem:[%s145 + $0x38] sm:$0xff]
    %v154 = vld [vmem:[%s145 + $0x40] sm:$0xff]
    %v155 = vld [vmem:[%s145 + $0x48] sm:$0xff]
    %v156 = vld [vmem:[%s145 + $0x50] sm:$0xff]
    %v157 = vld [vmem:[%s145 + $0x58] sm:$0xff]
    %v158 = vld [vmem:[%s145 + $0x60] sm:$0xff]
    %v159 = vld [vmem:[%s145 + $0x68] sm:$0xff]
    %v160 = vld [vmem:[%s145 + $0x70] sm:$0xff]
    %v161 = vld [vmem:[%s145 + $0x78] sm:$0xff]
    %v162 = vld [vmem:[%s1] sm:$0xff]
    %v163 = vld [vmem:[%s1 + $0x8] sm:$0xff]
    %v164 = vld [vmem:[%s1 + $0x10] sm:$0xff]
    %v165 = vld [vmem:[%s1 + $0x18] sm:$0xff]
    %v166 = vld [vmem:[%s1 + $0x20] sm:$0xff]
    %v167 = vld [vmem:[%s1 + $0x28] sm:$0xff]
    %v168 = vld [vmem:[%s1 + $0x30] sm:$0xff]
    %v169 = vld [vmem:[%s1 + $0x38] sm:$0xff]
    %v170 = vld [vmem:[%s1 + $0x40] sm:$0xff]
    %v171 = vld [vmem:[%s1 + $0x48] sm:$0xff]
    %v172 = vld [vmem:[%s1 + $0x50] sm:$0xff]
    %v173 = vld [vmem:[%s1 + $0x58] sm:$0xff]
    %v174 = vld [vmem:[%s1 + $0x60] sm:$0xff]
    %v175 = vld [vmem:[%s1 + $0x68] sm:$0xff]
    %v176 = vld [vmem:[%s1 + $0x70] sm:$0xff]
    %v177 = vld [vmem:[%s1 + $0x78] sm:$0xff]
    %178 = vmatprep.subr.mxu0 0.0
    %179 = vmatpush1.xpose.msra.mxu0 %v177
    %180 = vmatprep.subr.mxu0 0.0
    %181 = vmatpush1.xpose.msra.mxu0 %v176
    %182 = vmatprep.subr.mxu0 0.0
    %183 = vmatpush1.xpose.msra.mxu0 %v175
    %184 = vmatprep.subr.mxu0 0.0
    %185 = vmatpush1.xpose.msra.mxu0 %v174
    %186 = vmatprep.subr.mxu0 0.0
    %187 = vmatpush1.xpose.msra.mxu0 %v173
    %188 = vmatprep.subr.mxu0 0.0
    %189 = vmatpush1.xpose.msra.mxu0 %v172
    %190 = vmatprep.subr.mxu0 0.0
    %191 = vmatpush1.xpose.msra.mxu0 %v171
    %192 = vmatprep.subr.mxu0 0.0
    %193 = vmatpush1.xpose.msra.mxu0 %v170
    %194 = vmatprep.subr.mxu0 0.0
    %195 = vmatpush1.xpose.msra.mxu0 %v169
    %196 = vmatprep.subr.mxu0 0.0
    %197 = vmatpush1.xpose.msra.mxu0 %v168
    %198 = vmatprep.subr.mxu0 0.0
    %199 = vmatpush1.xpose.msra.mxu0 %v167
    %200 = vmatprep.subr.mxu0 0.0
    %201 = vmatpush1.xpose.msra.mxu0 %v166
    %202 = vmatprep.subr.mxu0 0.0
    %203 = vmatpush1.xpose.msra.mxu0 %v165
    %204 = vmatprep.subr.mxu0 0.0
    %205 = vmatpush1.xpose.msra.mxu0 %v164
    %206 = vmatprep.subr.mxu0 0.0
    %207 = vmatpush1.xpose.msra.mxu0 %v163
    %208 = vmatprep.subr.mxu0 0.0
    %209 = vmatpush1.xpose.msra.mxu0 %v162
    %210 = vmatprep.subr.mxu0 0.0
    %211 = vmatpush2.xpose.msra.mxu0 0.0
    %212 = vmatprep.subr.mxu0 0.0
    %213 = vmatpush2.xpose.msra.mxu0 0.0
    %214 = vmatprep.subr.mxu0 0.0
    %215 = vmatpush2.xpose.msra.mxu0 0.0
    %216 = vmatprep.subr.mxu0 0.0
    %217 = vmatpush2.xpose.msra.mxu0 0.0
    %218 = vmatprep.subr.mxu0 0.0
    %219 = vmatpush2.xpose.msra.mxu0 0.0
    %220 = vmatprep.subr.mxu0 0.0
    %221 = vmatpush2.xpose.msra.mxu0 0.0
    %222 = vmatprep.subr.mxu0 0.0
    %223 = vmatpush2.xpose.msra.mxu0 0.0
    %224 = vmatprep.subr.mxu0 0.0
    %225 = vmatpush2.xpose.msra.mxu0 0.0
    %226 = vmatprep.subr.mxu0 0.0
    %227 = vmatpush2.xpose.msra.mxu0 0.0
    %228 = vmatprep.subr.mxu0 0.0
    %229 = vmatpush2.xpose.msra.mxu0 0.0
    %230 = vmatprep.subr.mxu0 0.0
    %231 = vmatpush2.xpose.msra.mxu0 0.0
    %232 = vmatprep.subr.mxu0 0.0
    %233 = vmatpush2.xpose.msra.mxu0 0.0
    %234 = vmatprep.subr.mxu0 0.0
    %235 = vmatpush2.xpose.msra.mxu0 0.0
    %236 = vmatprep.subr.mxu0 0.0
    %237 = vmatpush2.xpose.msra.mxu0 0.0
    %238 = vmatprep.subr.mxu0 0.0
    %239 = vmatpush2.xpose.msra.mxu0 0.0
    %240 = vmatprep.subr.mxu0 0.0
    %241 = vmatpush2.xpose.msra.mxu0 0.0
    %242 = vmatprep.mubr.f32.mxu0 0.0
    %243 = vmatmul.mubr.f32.gmra.mxu0 %v146
    %v244 = vpop.f32.mrf.mxu0
    %v245 = vadd.f32 0.0, %v244
    %v246 = vpop.f32.mrf.mxu0
    %247 = vmatprep.mubr.f32.mxu0 0.0
    %248 = vmatmul.mubr.f32.gmra.mxu0 %v147
    %v249 = vpop.f32.mrf.mxu0
    %v250 = vadd.f32 0.0, %v249
    %v251 = vpop.f32.mrf.mxu0
    %252 = vmatprep.mubr.f32.mxu0 0.0
    %253 = vmatmul.mubr.f32.gmra.mxu0 %v148
    %v254 = vpop.f32.mrf.mxu0
    %v255 = vadd.f32 0.0, %v254
    %v256 = vpop.f32.mrf.mxu0
    %257 = vmatprep.mubr.f32.mxu0 0.0
    %258 = vmatmul.mubr.f32.gmra.mxu0 %v149
    %v259 = vpop.f32.mrf.mxu0
    %v260 = vadd.f32 0.0, %v259
    %v261 = vpop.f32.mrf.mxu0
    %262 = vmatprep.mubr.f32.mxu0 0.0
    %263 = vmatmul.mubr.f32.gmra.mxu0 %v150
    %v264 = vpop.f32.mrf.mxu0
    %v265 = vadd.f32 0.0, %v264
    %v266 = vpop.f32.mrf.mxu0
    %267 = vmatprep.mubr.f32.mxu0 0.0
    %268 = vmatmul.mubr.f32.gmra.mxu0 %v151
    %v269 = vpop.f32.mrf.mxu0
    %v270 = vadd.f32 0.0, %v269
    %v271 = vpop.f32.mrf.mxu0
    %272 = vmatprep.mubr.f32.mxu0 0.0
    %273 = vmatmul.mubr.f32.gmra.mxu0 %v152
    %v274 = vpop.f32.mrf.mxu0
    %v275 = vadd.f32 0.0, %v274
    %v276 = vpop.f32.mrf.mxu0
    %277 = vmatprep.mubr.f32.mxu0 0.0
    %278 = vmatmul.mubr.f32.gmra.mxu0 %v153
    %v279 = vpop.f32.mrf.mxu0
    %v280 = vadd.f32 0.0, %v279
    %v281 = vpop.f32.mrf.mxu0
    %282 = vmatprep.mubr.f32.mxu0 0.0
    %283 = vmatmul.mubr.f32.gmra.mxu0 %v154
    %v284 = vpop.f32.mrf.mxu0
    %v285 = vadd.f32 0.0, %v284
    %v286 = vpop.f32.mrf.mxu0
    %287 = vmatprep.mubr.f32.mxu0 0.0
    %288 = vmatmul.mubr.f32.gmra.mxu0 %v155
    %v289 = vpop.f32.mrf.mxu0
    %v290 = vadd.f32 0.0, %v289
    %v291 = vpop.f32.mrf.mxu0
    %292 = vmatprep.mubr.f32.mxu0 0.0
    %293 = vmatmul.mubr.f32.gmra.mxu0 %v156
    %v294 = vpop.f32.mrf.mxu0
    %v295 = vadd.f32 0.0, %v294
    %v296 = vpop.f32.mrf.mxu0
    %297 = vmatprep.mubr.f32.mxu0 0.0
    %298 = vmatmul.mubr.f32.gmra.mxu0 %v157
    %v299 = vpop.f32.mrf.mxu0
    %v300 = vadd.f32 0.0, %v299
    %v301 = vpop.f32.mrf.mxu0
    %302 = vmatprep.mubr.f32.mxu0 0.0
    %303 = vmatmul.mubr.f32.gmra.mxu0 %v158
    %v304 = vpop.f32.mrf.mxu0
    %v305 = vadd.f32 0.0, %v304
    %v306 = vpop.f32.mrf.mxu0
    %307 = vmatprep.mubr.f32.mxu0 0.0
    %308 = vmatmul.mubr.f32.gmra.mxu0 %v159
    %v309 = vpop.f32.mrf.mxu0
    %v310 = vadd.f32 0.0, %v309
    %v311 = vpop.f32.mrf.mxu0
    %312 = vmatprep.mubr.f32.mxu0 0.0
    %313 = vmatmul.mubr.f32.gmra.mxu0 %v160
    %v314 = vpop.f32.mrf.mxu0
    %v315 = vadd.f32 0.0, %v314
    %v316 = vpop.f32.mrf.mxu0
    %317 = vmatprep.mubr.f32.mxu0 0.0
    %318 = vmatmul.mubr.f32.gmra.mxu0 %v161
    %v319 = vpop.f32.mrf.mxu0
    %v320 = vadd.f32 0.0, %v319
    %v321 = vpop.f32.mrf.mxu0
    %322 = vdwg.mxu0
    %v323 = vld [vmem:[%s7] sm:$0x1]
    %v325 = vlaneseq
    %v326 = vshrl.u32 %v325, 7
    %v327 = vsub.s32 0, %v326
    %v328 = vrot.slane %v323, %v327
    %v330 = vmul.f32 %v245, %v328
    %v331 = vmul.f32 %v250, %v328
    %v332 = vmul.f32 %v255, %v328
    %v333 = vmul.f32 %v260, %v328
    %v334 = vmul.f32 %v265, %v328
    %v335 = vmul.f32 %v270, %v328
    %v336 = vmul.f32 %v275, %v328
    %v337 = vmul.f32 %v280, %v328
    %v338 = vmul.f32 %v285, %v328
    %v339 = vmul.f32 %v290, %v328
    %v340 = vmul.f32 %v295, %v328
    %v341 = vmul.f32 %v300, %v328
    %v342 = vmul.f32 %v305, %v328
    %v343 = vmul.f32 %v310, %v328
    %v344 = vmul.f32 %v315, %v328
    %v345 = vmul.f32 %v320, %v328
    %v346 = vld [vmem:[%s5] sm:$0xff]
    %v347 = vld [vmem:[%s5 + $0x8] sm:$0xff]
    %v348 = vld [vmem:[%s5 + $0x10] sm:$0xff]
    %v349 = vld [vmem:[%s5 + $0x18] sm:$0xff]
    %v350 = vld [vmem:[%s5 + $0x20] sm:$0xff]
    %v351 = vld [vmem:[%s5 + $0x28] sm:$0xff]
    %v352 = vld [vmem:[%s5 + $0x30] sm:$0xff]
    %v353 = vld [vmem:[%s5 + $0x38] sm:$0xff]
    %v354 = vld [vmem:[%s5 + $0x40] sm:$0xff]
    %v355 = vld [vmem:[%s5 + $0x48] sm:$0xff]
    %v356 = vld [vmem:[%s5 + $0x50] sm:$0xff]
    %v357 = vld [vmem:[%s5 + $0x58] sm:$0xff]
    %v358 = vld [vmem:[%s5 + $0x60] sm:$0xff]
    %v359 = vld [vmem:[%s5 + $0x68] sm:$0xff]
    %v360 = vld [vmem:[%s5 + $0x70] sm:$0xff]
    %v361 = vld [vmem:[%s5 + $0x78] sm:$0xff]
    %363 = vset.pattern.permute.xlu0 0
    %364 = vperm.xlu0 %363, %v346
    %v365 = vpop.permute.xlu0 %364
    %368 = vset.pattern.permute.xlu0 0
    %369 = vperm.xlu0 %368, %v347
    %v370 = vpop.permute.xlu0 %369
    %373 = vset.pattern.permute.xlu0 0
    %374 = vperm.xlu0 %373, %v348
    %v375 = vpop.permute.xlu0 %374
    %378 = vset.pattern.permute.xlu0 0
    %379 = vperm.xlu0 %378, %v349
    %v380 = vpop.permute.xlu0 %379
    %383 = vset.pattern.permute.xlu0 0
    %384 = vperm.xlu0 %383, %v350
    %v385 = vpop.permute.xlu0 %384
    %388 = vset.pattern.permute.xlu0 0
    %389 = vperm.xlu0 %388, %v351
    %v390 = vpop.permute.xlu0 %389
    %393 = vset.pattern.permute.xlu0 0
    %394 = vperm.xlu0 %393, %v352
    %v395 = vpop.permute.xlu0 %394
    %398 = vset.pattern.permute.xlu0 0
    %399 = vperm.xlu0 %398, %v353
    %v400 = vpop.permute.xlu0 %399
    %403 = vset.pattern.permute.xlu0 0
    %404 = vperm.xlu0 %403, %v354
    %v405 = vpop.permute.xlu0 %404
    %408 = vset.pattern.permute.xlu0 0
    %409 = vperm.xlu0 %408, %v355
    %v410 = vpop.permute.xlu0 %409
    %413 = vset.pattern.permute.xlu0 0
    %414 = vperm.xlu0 %413, %v356
    %v415 = vpop.permute.xlu0 %414
    %418 = vset.pattern.permute.xlu0 0
    %419 = vperm.xlu0 %418, %v357
    %v420 = vpop.permute.xlu0 %419
    %423 = vset.pattern.permute.xlu0 0
    %424 = vperm.xlu0 %423, %v358
    %v425 = vpop.permute.xlu0 %424
    %428 = vset.pattern.permute.xlu0 0
    %429 = vperm.xlu0 %428, %v359
    %v430 = vpop.permute.xlu0 %429
    %433 = vset.pattern.permute.xlu0 0
    %434 = vperm.xlu0 %433, %v360
    %v435 = vpop.permute.xlu0 %434
    %438 = vset.pattern.permute.xlu0 0
    %439 = vperm.xlu0 %438, %v361
    %v440 = vpop.permute.xlu0 %439
    %v442 = vmul.f32 %v330, %v365
    %v443 = vmul.f32 %v331, %v370
    %v444 = vmul.f32 %v332, %v375
    %v445 = vmul.f32 %v333, %v380
    %v446 = vmul.f32 %v334, %v385
    %v447 = vmul.f32 %v335, %v390
    %v448 = vmul.f32 %v336, %v395
    %v449 = vmul.f32 %v337, %v400
    %v450 = vmul.f32 %v338, %v405
    %v451 = vmul.f32 %v339, %v410
    %v452 = vmul.f32 %v340, %v415
    %v453 = vmul.f32 %v341, %v420
    %v454 = vmul.f32 %v342, %v425
    %v455 = vmul.f32 %v343, %v430
    %v456 = vmul.f32 %v344, %v435
    %v457 = vmul.f32 %v345, %v440
    %458 = vst [vmem:[#allocation2] sm:$0xff] %v442
    %459 = vst [vmem:[#allocation2 + $0x8] sm:$0xff] %v443
    %460 = vst [vmem:[#allocation2 + $0x10] sm:$0xff] %v444
    %461 = vst [vmem:[#allocation2 + $0x18] sm:$0xff] %v445
    %462 = vst [vmem:[#allocation2 + $0x20] sm:$0xff] %v446
    %463 = vst [vmem:[#allocation2 + $0x28] sm:$0xff] %v447
    %464 = vst [vmem:[#allocation2 + $0x30] sm:$0xff] %v448
    %465 = vst [vmem:[#allocation2 + $0x38] sm:$0xff] %v449
    %466 = vst [vmem:[#allocation2 + $0x40] sm:$0xff] %v450
    %467 = vst [vmem:[#allocation2 + $0x48] sm:$0xff] %v451
    %468 = vst [vmem:[#allocation2 + $0x50] sm:$0xff] %v452
    %469 = vst [vmem:[#allocation2 + $0x58] sm:$0xff] %v453
    %470 = vst [vmem:[#allocation2 + $0x60] sm:$0xff] %v454
    %471 = vst [vmem:[#allocation2 + $0x68] sm:$0xff] %v455
    %472 = vst [vmem:[#allocation2 + $0x70] sm:$0xff] %v456
    %473 = vst [vmem:[#allocation2 + $0x78] sm:$0xff] %v457
    %v475 = vlaneseq
    %v476 = vshrl.u32 %v475, 7
    %v477 = vsub.s32 0, %v476
    %v478 = vrot.slane %v144, %v477
    %v480 = vadd.f32 %v330, %v478
    %v481 = vadd.f32 %v331, %v478
    %v482 = vadd.f32 %v332, %v478
    %v483 = vadd.f32 %v333, %v478
    %v484 = vadd.f32 %v334, %v478
    %v485 = vadd.f32 %v335, %v478
    %v486 = vadd.f32 %v336, %v478
    %v487 = vadd.f32 %v337, %v478
    %v488 = vadd.f32 %v338, %v478
    %v489 = vadd.f32 %v339, %v478
    %v490 = vadd.f32 %v340, %v478
    %v491 = vadd.f32 %v341, %v478
    %v492 = vadd.f32 %v342, %v478
    %v493 = vadd.f32 %v343, %v478
    %v494 = vadd.f32 %v344, %v478
    %v495 = vadd.f32 %v345, %v478
    %496 = vmax.xlane.f32.xlu0 %v480
    %v497 = vpop.xlane.xlu0 %496
    %498 = vmax.xlane.f32.xlu0 %v481
    %v499 = vpop.xlane.xlu0 %498
    %500 = vmax.xlane.f32.xlu0 %v482
    %v501 = vpop.xlane.xlu0 %500
    %502 = vmax.xlane.f32.xlu0 %v483
    %v503 = vpop.xlane.xlu0 %502
    %504 = vmax.xlane.f32.xlu0 %v484
    %v505 = vpop.xlane.xlu0 %504
    %506 = vmax.xlane.f32.xlu0 %v485
    %v507 = vpop.xlane.xlu0 %506
    %508 = vmax.xlane.f32.xlu0 %v486
    %v509 = vpop.xlane.xlu0 %508
    %510 = vmax.xlane.f32.xlu0 %v487
    %v511 = vpop.xlane.xlu0 %510
    %512 = vmax.xlane.f32.xlu0 %v488
    %v513 = vpop.xlane.xlu0 %512
    %514 = vmax.xlane.f32.xlu0 %v489
    %v515 = vpop.xlane.xlu0 %514
    %516 = vmax.xlane.f32.xlu0 %v490
    %v517 = vpop.xlane.xlu0 %516
    %518 = vmax.xlane.f32.xlu0 %v491
    %v519 = vpop.xlane.xlu0 %518
    %520 = vmax.xlane.f32.xlu0 %v492
    %v521 = vpop.xlane.xlu0 %520
    %522 = vmax.xlane.f32.xlu0 %v493
    %v523 = vpop.xlane.xlu0 %522
    %524 = vmax.xlane.f32.xlu0 %v494
    %v525 = vpop.xlane.xlu0 %524
    %526 = vmax.xlane.f32.xlu0 %v495
    %v527 = vpop.xlane.xlu0 %526
    %v528 = vsub.f32 %v480, %v497
    %v529 = vsub.f32 %v481, %v499
    %v530 = vsub.f32 %v482, %v501
    %v531 = vsub.f32 %v483, %v503
    %v532 = vsub.f32 %v484, %v505
    %v533 = vsub.f32 %v485, %v507
    %v534 = vsub.f32 %v486, %v509
    %v535 = vsub.f32 %v487, %v511
    %v536 = vsub.f32 %v488, %v513
    %v537 = vsub.f32 %v489, %v515
    %v538 = vsub.f32 %v490, %v517
    %v539 = vsub.f32 %v491, %v519
    %v540 = vsub.f32 %v492, %v521
    %v541 = vsub.f32 %v493, %v523
    %v542 = vsub.f32 %v494, %v525
    %v543 = vsub.f32 %v495, %v527
    %v544 = vmul.f32 %v528, 1.442695
    %v545 = vpow.pop %v544
    %v546 = vmul.f32 %v529, 1.442695
    %v547 = vpow.pop %v546
    %v548 = vmul.f32 %v530, 1.442695
    %v549 = vpow.pop %v548
    %v550 = vmul.f32 %v531, 1.442695
    %v551 = vpow.pop %v550
    %v552 = vmul.f32 %v532, 1.442695
    %v553 = vpow.pop %v552
    %v554 = vmul.f32 %v533, 1.442695
    %v555 = vpow.pop %v554
    %v556 = vmul.f32 %v534, 1.442695
    %v557 = vpow.pop %v556
    %v558 = vmul.f32 %v535, 1.442695
    %v559 = vpow.pop %v558
    %v560 = vmul.f32 %v536, 1.442695
    %v561 = vpow.pop %v560
    %v562 = vmul.f32 %v537, 1.442695
    %v563 = vpow.pop %v562
    %v564 = vmul.f32 %v538, 1.442695
    %v565 = vpow.pop %v564
    %v566 = vmul.f32 %v539, 1.442695
    %v567 = vpow.pop %v566
    %v568 = vmul.f32 %v540, 1.442695
    %v569 = vpow.pop %v568
    %v570 = vmul.f32 %v541, 1.442695
    %v571 = vpow.pop %v570
    %v572 = vmul.f32 %v542, 1.442695
    %v573 = vpow.pop %v572
    %v574 = vmul.f32 %v543, 1.442695
    %v575 = vpow.pop %v574
    %576 = vadd.xlane.f32.xlu0 %v545
    %v577 = vpop.xlane.xlu0 %576
    %578 = vadd.xlane.f32.xlu0 %v547
    %v579 = vpop.xlane.xlu0 %578
    %580 = vadd.xlane.f32.xlu0 %v549
    %v581 = vpop.xlane.xlu0 %580
    %582 = vadd.xlane.f32.xlu0 %v551
    %v583 = vpop.xlane.xlu0 %582
    %584 = vadd.xlane.f32.xlu0 %v553
    %v585 = vpop.xlane.xlu0 %584
    %586 = vadd.xlane.f32.xlu0 %v555
    %v587 = vpop.xlane.xlu0 %586
    %588 = vadd.xlane.f32.xlu0 %v557
    %v589 = vpop.xlane.xlu0 %588
    %590 = vadd.xlane.f32.xlu0 %v559
    %v591 = vpop.xlane.xlu0 %590
    %592 = vadd.xlane.f32.xlu0 %v561
    %v593 = vpop.xlane.xlu0 %592
    %594 = vadd.xlane.f32.xlu0 %v563
    %v595 = vpop.xlane.xlu0 %594
    %596 = vadd.xlane.f32.xlu0 %v565
    %v597 = vpop.xlane.xlu0 %596
    %598 = vadd.xlane.f32.xlu0 %v567
    %v599 = vpop.xlane.xlu0 %598
    %600 = vadd.xlane.f32.xlu0 %v569
    %v601 = vpop.xlane.xlu0 %600
    %602 = vadd.xlane.f32.xlu0 %v571
    %v603 = vpop.xlane.xlu0 %602
    %604 = vadd.xlane.f32.xlu0 %v573
    %v605 = vpop.xlane.xlu0 %604
    %606 = vadd.xlane.f32.xlu0 %v575
    %v607 = vpop.xlane.xlu0 %606
    %v608 = vsub.f32 %v528, %v128
    %v609 = vsub.f32 %v529, %v129
    %v610 = vsub.f32 %v530, %v130
    %v611 = vsub.f32 %v531, %v131
    %v612 = vsub.f32 %v532, %v132
    %v613 = vsub.f32 %v533, %v133
    %v614 = vsub.f32 %v534, %v134
    %v615 = vsub.f32 %v535, %v135
    %v616 = vsub.f32 %v536, %v136
    %v617 = vsub.f32 %v537, %v137
    %v618 = vsub.f32 %v538, %v138
    %v619 = vsub.f32 %v539, %v139
    %v620 = vsub.f32 %v540, %v140
    %v621 = vsub.f32 %v541, %v141
    %v622 = vsub.f32 %v542, %v142
    %v623 = vsub.f32 %v543, %v143
    %v624 = vmul.f32 %v545, %v608
    %v625 = vmul.f32 %v547, %v609
    %v626 = vmul.f32 %v549, %v610
    %v627 = vmul.f32 %v551, %v611
    %v628 = vmul.f32 %v553, %v612
    %v629 = vmul.f32 %v555, %v613
    %v630 = vmul.f32 %v557, %v614
    %v631 = vmul.f32 %v559, %v615
    %v632 = vmul.f32 %v561, %v616
    %v633 = vmul.f32 %v563, %v617
    %v634 = vmul.f32 %v565, %v618
    %v635 = vmul.f32 %v567, %v619
    %v636 = vmul.f32 %v569, %v620
    %v637 = vmul.f32 %v571, %v621
    %v638 = vmul.f32 %v573, %v622
    %v639 = vmul.f32 %v575, %v623
    %640 = vadd.xlane.f32.xlu0 %v624
    %v641 = vpop.xlane.xlu0 %640
    %642 = vadd.xlane.f32.xlu0 %v625
    %v643 = vpop.xlane.xlu0 %642
    %644 = vadd.xlane.f32.xlu0 %v626
    %v645 = vpop.xlane.xlu0 %644
    %646 = vadd.xlane.f32.xlu0 %v627
    %v647 = vpop.xlane.xlu0 %646
    %648 = vadd.xlane.f32.xlu0 %v628
    %v649 = vpop.xlane.xlu0 %648
    %650 = vadd.xlane.f32.xlu0 %v629
    %v651 = vpop.xlane.xlu0 %650
    %652 = vadd.xlane.f32.xlu0 %v630
    %v653 = vpop.xlane.xlu0 %652
    %654 = vadd.xlane.f32.xlu0 %v631
    %v655 = vpop.xlane.xlu0 %654
    %656 = vadd.xlane.f32.xlu0 %v632
    %v657 = vpop.xlane.xlu0 %656
    %658 = vadd.xlane.f32.xlu0 %v633
    %v659 = vpop.xlane.xlu0 %658
    %660 = vadd.xlane.f32.xlu0 %v634
    %v661 = vpop.xlane.xlu0 %660
    %662 = vadd.xlane.f32.xlu0 %v635
    %v663 = vpop.xlane.xlu0 %662
    %664 = vadd.xlane.f32.xlu0 %v636
    %v665 = vpop.xlane.xlu0 %664
    %666 = vadd.xlane.f32.xlu0 %v637
    %v667 = vpop.xlane.xlu0 %666
    %668 = vadd.xlane.f32.xlu0 %v638
    %v669 = vpop.xlane.xlu0 %668
    %670 = vadd.xlane.f32.xlu0 %v639
    %v671 = vpop.xlane.xlu0 %670
    %v672 = vrcp.pop %v577
    %v673 = vrcp.pop %v579
    %v674 = vrcp.pop %v581
    %v675 = vrcp.pop %v583
    %v676 = vrcp.pop %v585
    %v677 = vrcp.pop %v587
    %v678 = vrcp.pop %v589
    %v679 = vrcp.pop %v591
    %v680 = vrcp.pop %v593
    %v681 = vrcp.pop %v595
    %v682 = vrcp.pop %v597
    %v683 = vrcp.pop %v599
    %v684 = vrcp.pop %v601
    %v685 = vrcp.pop %v603
    %v686 = vrcp.pop %v605
    %v687 = vrcp.pop %v607
    %v688 = vmul.f32 %v641, %v672
    %v689 = vmul.f32 %v643, %v673
    %v690 = vmul.f32 %v645, %v674
    %v691 = vmul.f32 %v647, %v675
    %v692 = vmul.f32 %v649, %v676
    %v693 = vmul.f32 %v651, %v677
    %v694 = vmul.f32 %v653, %v678
    %v695 = vmul.f32 %v655, %v679
    %v696 = vmul.f32 %v657, %v680
    %v697 = vmul.f32 %v659, %v681
    %v698 = vmul.f32 %v661, %v682
    %v699 = vmul.f32 %v663, %v683
    %v700 = vmul.f32 %v665, %v684
    %v701 = vmul.f32 %v667, %v685
    %v702 = vmul.f32 %v669, %v686
    %v703 = vmul.f32 %v671, %v687
    %v704 = vlog2.pop %v577
    %v705 = vmul.f32 %v704, 0.6931472
    %v706 = vlog2.pop %v579
    %v707 = vmul.f32 %v706, 0.6931472
    %v708 = vlog2.pop %v581
    %v709 = vmul.f32 %v708, 0.6931472
    %v710 = vlog2.pop %v583
    %v711 = vmul.f32 %v710, 0.6931472
    %v712 = vlog2.pop %v585
    %v713 = vmul.f32 %v712, 0.6931472
    %v714 = vlog2.pop %v587
    %v715 = vmul.f32 %v714, 0.6931472
    %v716 = vlog2.pop %v589
    %v717 = vmul.f32 %v716, 0.6931472
    %v718 = vlog2.pop %v591
    %v719 = vmul.f32 %v718, 0.6931472
    %v720 = vlog2.pop %v593
    %v721 = vmul.f32 %v720, 0.6931472
    %v722 = vlog2.pop %v595
    %v723 = vmul.f32 %v722, 0.6931472
    %v724 = vlog2.pop %v597
    %v725 = vmul.f32 %v724, 0.6931472
    %v726 = vlog2.pop %v599
    %v727 = vmul.f32 %v726, 0.6931472
    %v728 = vlog2.pop %v601
    %v729 = vmul.f32 %v728, 0.6931472
    %v730 = vlog2.pop %v603
    %v731 = vmul.f32 %v730, 0.6931472
    %v732 = vlog2.pop %v605
    %v733 = vmul.f32 %v732, 0.6931472
    %v734 = vlog2.pop %v607
    %v735 = vmul.f32 %v734, 0.6931472
    %v736 = vsub.f32 %v688, %v705
    %v737 = vsub.f32 %v689, %v707
    %v738 = vsub.f32 %v690, %v709
    %v739 = vsub.f32 %v691, %v711
    %v740 = vsub.f32 %v692, %v713
    %v741 = vsub.f32 %v693, %v715
    %v742 = vsub.f32 %v694, %v717
    %v743 = vsub.f32 %v695, %v719
    %v744 = vsub.f32 %v696, %v721
    %v745 = vsub.f32 %v697, %v723
    %v746 = vsub.f32 %v698, %v725
    %v747 = vsub.f32 %v699, %v727
    %v748 = vsub.f32 %v700, %v729
    %v749 = vsub.f32 %v701, %v731
    %v750 = vsub.f32 %v702, %v733
    %v751 = vsub.f32 %v703, %v735
    %s752 = scalar_lea.vmem %s1, %s35
    %v753 = vld [vmem:[%s752] sm:$0xff]
    %v754 = vld [vmem:[%s752 + $0x8] sm:$0xff]
    %v755 = vld [vmem:[%s752 + $0x10] sm:$0xff]
    %v756 = vld [vmem:[%s752 + $0x18] sm:$0xff]
    %v757 = vld [vmem:[%s752 + $0x20] sm:$0xff]
    %v758 = vld [vmem:[%s752 + $0x28] sm:$0xff]
    %v759 = vld [vmem:[%s752 + $0x30] sm:$0xff]
    %v760 = vld [vmem:[%s752 + $0x38] sm:$0xff]
    %v761 = vld [vmem:[%s752 + $0x40] sm:$0xff]
    %v762 = vld [vmem:[%s752 + $0x48] sm:$0xff]
    %v763 = vld [vmem:[%s752 + $0x50] sm:$0xff]
    %v764 = vld [vmem:[%s752 + $0x58] sm:$0xff]
    %v765 = vld [vmem:[%s752 + $0x60] sm:$0xff]
    %v766 = vld [vmem:[%s752 + $0x68] sm:$0xff]
    %v767 = vld [vmem:[%s752 + $0x70] sm:$0xff]
    %v768 = vld [vmem:[%s752 + $0x78] sm:$0xff]
    %v769 = vld [vmem:[%s0] sm:$0xff]
    %v770 = vld [vmem:[%s0 + $0x8] sm:$0xff]
    %v771 = vld [vmem:[%s0 + $0x10] sm:$0xff]
    %v772 = vld [vmem:[%s0 + $0x18] sm:$0xff]
    %v773 = vld [vmem:[%s0 + $0x20] sm:$0xff]
    %v774 = vld [vmem:[%s0 + $0x28] sm:$0xff]
    %v775 = vld [vmem:[%s0 + $0x30] sm:$0xff]
    %v776 = vld [vmem:[%s0 + $0x38] sm:$0xff]
    %v777 = vld [vmem:[%s0 + $0x40] sm:$0xff]
    %v778 = vld [vmem:[%s0 + $0x48] sm:$0xff]
    %v779 = vld [vmem:[%s0 + $0x50] sm:$0xff]
    %v780 = vld [vmem:[%s0 + $0x58] sm:$0xff]
    %v781 = vld [vmem:[%s0 + $0x60] sm:$0xff]
    %v782 = vld [vmem:[%s0 + $0x68] sm:$0xff]
    %v783 = vld [vmem:[%s0 + $0x70] sm:$0xff]
    %v784 = vld [vmem:[%s0 + $0x78] sm:$0xff]
    %785 = vmatprep.subr.mxu0 0.0
    %786 = vmatpush1.xpose.msra.mxu0 %v784
    %787 = vmatprep.subr.mxu0 0.0
    %788 = vmatpush1.xpose.msra.mxu0 %v783
    %789 = vmatprep.subr.mxu0 0.0
    %790 = vmatpush1.xpose.msra.mxu0 %v782
    %791 = vmatprep.subr.mxu0 0.0
    %792 = vmatpush1.xpose.msra.mxu0 %v781
    %793 = vmatprep.subr.mxu0 0.0
    %794 = vmatpush1.xpose.msra.mxu0 %v780
    %795 = vmatprep.subr.mxu0 0.0
    %796 = vmatpush1.xpose.msra.mxu0 %v779
    %797 = vmatprep.subr.mxu0 0.0
    %798 = vmatpush1.xpose.msra.mxu0 %v778
    %799 = vmatprep.subr.mxu0 0.0
    %800 = vmatpush1.xpose.msra.mxu0 %v777
    %801 = vmatprep.subr.mxu0 0.0
    %802 = vmatpush1.xpose.msra.mxu0 %v776
    %803 = vmatprep.subr.mxu0 0.0
    %804 = vmatpush1.xpose.msra.mxu0 %v775
    %805 = vmatprep.subr.mxu0 0.0
    %806 = vmatpush1.xpose.msra.mxu0 %v774
    %807 = vmatprep.subr.mxu0 0.0
    %808 = vmatpush1.xpose.msra.mxu0 %v773
    %809 = vmatprep.subr.mxu0 0.0
    %810 = vmatpush1.xpose.msra.mxu0 %v772
    %811 = vmatprep.subr.mxu0 0.0
    %812 = vmatpush1.xpose.msra.mxu0 %v771
    %813 = vmatprep.subr.mxu0 0.0
    %814 = vmatpush1.xpose.msra.mxu0 %v770
    %815 = vmatprep.subr.mxu0 0.0
    %816 = vmatpush1.xpose.msra.mxu0 %v769
    %817 = vmatprep.subr.mxu0 0.0
    %818 = vmatpush2.xpose.msra.mxu0 0.0
    %819 = vmatprep.subr.mxu0 0.0
    %820 = vmatpush2.xpose.msra.mxu0 0.0
    %821 = vmatprep.subr.mxu0 0.0
    %822 = vmatpush2.xpose.msra.mxu0 0.0
    %823 = vmatprep.subr.mxu0 0.0
    %824 = vmatpush2.xpose.msra.mxu0 0.0
    %825 = vmatprep.subr.mxu0 0.0
    %826 = vmatpush2.xpose.msra.mxu0 0.0
    %827 = vmatprep.subr.mxu0 0.0
    %828 = vmatpush2.xpose.msra.mxu0 0.0
    %829 = vmatprep.subr.mxu0 0.0
    %830 = vmatpush2.xpose.msra.mxu0 0.0
    %831 = vmatprep.subr.mxu0 0.0
    %832 = vmatpush2.xpose.msra.mxu0 0.0
    %833 = vmatprep.subr.mxu0 0.0
    %834 = vmatpush2.xpose.msra.mxu0 0.0
    %835 = vmatprep.subr.mxu0 0.0
    %836 = vmatpush2.xpose.msra.mxu0 0.0
    %837 = vmatprep.subr.mxu0 0.0
    %838 = vmatpush2.xpose.msra.mxu0 0.0
    %839 = vmatprep.subr.mxu0 0.0
    %840 = vmatpush2.xpose.msra.mxu0 0.0
    %841 = vmatprep.subr.mxu0 0.0
    %842 = vmatpush2.xpose.msra.mxu0 0.0
    %843 = vmatprep.subr.mxu0 0.0
    %844 = vmatpush2.xpose.msra.mxu0 0.0
    %845 = vmatprep.subr.mxu0 0.0
    %846 = vmatpush2.xpose.msra.mxu0 0.0
    %847 = vmatprep.subr.mxu0 0.0
    %848 = vmatpush2.xpose.msra.mxu0 0.0
    %849 = vmatprep.mubr.f32.mxu0 0.0
    %850 = vmatmul.mubr.f32.gmra.mxu0 %v753
    %v851 = vpop.f32.mrf.mxu0
    %v852 = vadd.f32 0.0, %v851
    %v853 = vpop.f32.mrf.mxu0
    %854 = vmatprep.mubr.f32.mxu0 0.0
    %855 = vmatmul.mubr.f32.gmra.mxu0 %v754
    %v856 = vpop.f32.mrf.mxu0
    %v857 = vadd.f32 0.0, %v856
    %v858 = vpop.f32.mrf.mxu0
    %859 = vmatprep.mubr.f32.mxu0 0.0
    %860 = vmatmul.mubr.f32.gmra.mxu0 %v755
    %v861 = vpop.f32.mrf.mxu0
    %v862 = vadd.f32 0.0, %v861
    %v863 = vpop.f32.mrf.mxu0
    %864 = vmatprep.mubr.f32.mxu0 0.0
    %865 = vmatmul.mubr.f32.gmra.mxu0 %v756
    %v866 = vpop.f32.mrf.mxu0
    %v867 = vadd.f32 0.0, %v866
    %v868 = vpop.f32.mrf.mxu0
    %869 = vmatprep.mubr.f32.mxu0 0.0
    %870 = vmatmul.mubr.f32.gmra.mxu0 %v757
    %v871 = vpop.f32.mrf.mxu0
    %v872 = vadd.f32 0.0, %v871
    %v873 = vpop.f32.mrf.mxu0
    %874 = vmatprep.mubr.f32.mxu0 0.0
    %875 = vmatmul.mubr.f32.gmra.mxu0 %v758
    %v876 = vpop.f32.mrf.mxu0
    %v877 = vadd.f32 0.0, %v876
    %v878 = vpop.f32.mrf.mxu0
    %879 = vmatprep.mubr.f32.mxu0 0.0
    %880 = vmatmul.mubr.f32.gmra.mxu0 %v759
    %v881 = vpop.f32.mrf.mxu0
    %v882 = vadd.f32 0.0, %v881
    %v883 = vpop.f32.mrf.mxu0
    %884 = vmatprep.mubr.f32.mxu0 0.0
    %885 = vmatmul.mubr.f32.gmra.mxu0 %v760
    %v886 = vpop.f32.mrf.mxu0
    %v887 = vadd.f32 0.0, %v886
    %v888 = vpop.f32.mrf.mxu0
    %889 = vmatprep.mubr.f32.mxu0 0.0
    %890 = vmatmul.mubr.f32.gmra.mxu0 %v761
    %v891 = vpop.f32.mrf.mxu0
    %v892 = vadd.f32 0.0, %v891
    %v893 = vpop.f32.mrf.mxu0
    %894 = vmatprep.mubr.f32.mxu0 0.0
    %895 = vmatmul.mubr.f32.gmra.mxu0 %v762
    %v896 = vpop.f32.mrf.mxu0
    %v897 = vadd.f32 0.0, %v896
    %v898 = vpop.f32.mrf.mxu0
    %899 = vmatprep.mubr.f32.mxu0 0.0
    %900 = vmatmul.mubr.f32.gmra.mxu0 %v763
    %v901 = vpop.f32.mrf.mxu0
    %v902 = vadd.f32 0.0, %v901
    %v903 = vpop.f32.mrf.mxu0
    %904 = vmatprep.mubr.f32.mxu0 0.0
    %905 = vmatmul.mubr.f32.gmra.mxu0 %v764
    %v906 = vpop.f32.mrf.mxu0
    %v907 = vadd.f32 0.0, %v906
    %v908 = vpop.f32.mrf.mxu0
    %909 = vmatprep.mubr.f32.mxu0 0.0
    %910 = vmatmul.mubr.f32.gmra.mxu0 %v765
    %v911 = vpop.f32.mrf.mxu0
    %v912 = vadd.f32 0.0, %v911
    %v913 = vpop.f32.mrf.mxu0
    %914 = vmatprep.mubr.f32.mxu0 0.0
    %915 = vmatmul.mubr.f32.gmra.mxu0 %v766
    %v916 = vpop.f32.mrf.mxu0
    %v917 = vadd.f32 0.0, %v916
    %v918 = vpop.f32.mrf.mxu0
    %919 = vmatprep.mubr.f32.mxu0 0.0
    %920 = vmatmul.mubr.f32.gmra.mxu0 %v767
    %v921 = vpop.f32.mrf.mxu0
    %v922 = vadd.f32 0.0, %v921
    %v923 = vpop.f32.mrf.mxu0
    %924 = vmatprep.mubr.f32.mxu0 0.0
    %925 = vmatmul.mubr.f32.gmra.mxu0 %v768
    %v926 = vpop.f32.mrf.mxu0
    %v927 = vadd.f32 0.0, %v926
    %v928 = vpop.f32.mrf.mxu0
    %929 = vdwg.mxu0
    %v930 = vld [vmem:[%s6] sm:$0x1]
    %v932 = vlaneseq
    %v933 = vshrl.u32 %v932, 7
    %v934 = vsub.s32 0, %v933
    %v935 = vrot.slane %v930, %v934
    %v937 = vmul.f32 %v852, %v935
    %v938 = vmul.f32 %v857, %v935
    %v939 = vmul.f32 %v862, %v935
    %v940 = vmul.f32 %v867, %v935
    %v941 = vmul.f32 %v872, %v935
    %v942 = vmul.f32 %v877, %v935
    %v943 = vmul.f32 %v882, %v935
    %v944 = vmul.f32 %v887, %v935
    %v945 = vmul.f32 %v892, %v935
    %v946 = vmul.f32 %v897, %v935
    %v947 = vmul.f32 %v902, %v935
    %v948 = vmul.f32 %v907, %v935
    %v949 = vmul.f32 %v912, %v935
    %v950 = vmul.f32 %v917, %v935
    %v951 = vmul.f32 %v922, %v935
    %v952 = vmul.f32 %v927, %v935
    %v953 = vadd.f32 %v937, %v478
    %v954 = vadd.f32 %v938, %v478
    %v955 = vadd.f32 %v939, %v478
    %v956 = vadd.f32 %v940, %v478
    %v957 = vadd.f32 %v941, %v478
    %v958 = vadd.f32 %v942, %v478
    %v959 = vadd.f32 %v943, %v478
    %v960 = vadd.f32 %v944, %v478
    %v961 = vadd.f32 %v945, %v478
    %v962 = vadd.f32 %v946, %v478
    %v963 = vadd.f32 %v947, %v478
    %v964 = vadd.f32 %v948, %v478
    %v965 = vadd.f32 %v949, %v478
    %v966 = vadd.f32 %v950, %v478
    %v967 = vadd.f32 %v951, %v478
    %v968 = vadd.f32 %v952, %v478
    %969 = vmax.xlane.f32.xlu0 %v953
    %v970 = vpop.xlane.xlu0 %969
    %971 = vmax.xlane.f32.xlu0 %v954
    %v972 = vpop.xlane.xlu0 %971
    %973 = vmax.xlane.f32.xlu0 %v955
    %v974 = vpop.xlane.xlu0 %973
    %975 = vmax.xlane.f32.xlu0 %v956
    %v976 = vpop.xlane.xlu0 %975
    %977 = vmax.xlane.f32.xlu0 %v957
    %v978 = vpop.xlane.xlu0 %977
    %979 = vmax.xlane.f32.xlu0 %v958
    %v980 = vpop.xlane.xlu0 %979
    %981 = vmax.xlane.f32.xlu0 %v959
    %v982 = vpop.xlane.xlu0 %981
    %983 = vmax.xlane.f32.xlu0 %v960
    %v984 = vpop.xlane.xlu0 %983
    %985 = vmax.xlane.f32.xlu0 %v961
    %v986 = vpop.xlane.xlu0 %985
    %987 = vmax.xlane.f32.xlu0 %v962
    %v988 = vpop.xlane.xlu0 %987
    %989 = vmax.xlane.f32.xlu0 %v963
    %v990 = vpop.xlane.xlu0 %989
    %991 = vmax.xlane.f32.xlu0 %v964
    %v992 = vpop.xlane.xlu0 %991
    %993 = vmax.xlane.f32.xlu0 %v965
    %v994 = vpop.xlane.xlu0 %993
    %995 = vmax.xlane.f32.xlu0 %v966
    %v996 = vpop.xlane.xlu0 %995
    %997 = vmax.xlane.f32.xlu0 %v967
    %v998 = vpop.xlane.xlu0 %997
    %999 = vmax.xlane.f32.xlu0 %v968
    %v1000 = vpop.xlane.xlu0 %999
    %v1001 = vsub.f32 %v953, %v970
    %v1002 = vsub.f32 %v954, %v972
    %v1003 = vsub.f32 %v955, %v974
    %v1004 = vsub.f32 %v956, %v976
    %v1005 = vsub.f32 %v957, %v978
    %v1006 = vsub.f32 %v958, %v980
    %v1007 = vsub.f32 %v959, %v982
    %v1008 = vsub.f32 %v960, %v984
    %v1009 = vsub.f32 %v961, %v986
    %v1010 = vsub.f32 %v962, %v988
    %v1011 = vsub.f32 %v963, %v990
    %v1012 = vsub.f32 %v964, %v992
    %v1013 = vsub.f32 %v965, %v994
    %v1014 = vsub.f32 %v966, %v996
    %v1015 = vsub.f32 %v967, %v998
    %v1016 = vsub.f32 %v968, %v1000
    %v1017 = vmul.f32 %v1001, 1.442695
    %v1018 = vpow.pop %v1017
    %v1019 = vmul.f32 %v1002, 1.442695
    %v1020 = vpow.pop %v1019
    %v1021 = vmul.f32 %v1003, 1.442695
    %v1022 = vpow.pop %v1021
    %v1023 = vmul.f32 %v1004, 1.442695
    %v1024 = vpow.pop %v1023
    %v1025 = vmul.f32 %v1005, 1.442695
    %v1026 = vpow.pop %v1025
    %v1027 = vmul.f32 %v1006, 1.442695
    %v1028 = vpow.pop %v1027
    %v1029 = vmul.f32 %v1007, 1.442695
    %v1030 = vpow.pop %v1029
    %v1031 = vmul.f32 %v1008, 1.442695
    %v1032 = vpow.pop %v1031
    %v1033 = vmul.f32 %v1009, 1.442695
    %v1034 = vpow.pop %v1033
    %v1035 = vmul.f32 %v1010, 1.442695
    %v1036 = vpow.pop %v1035
    %v1037 = vmul.f32 %v1011, 1.442695
    %v1038 = vpow.pop %v1037
    %v1039 = vmul.f32 %v1012, 1.442695
    %v1040 = vpow.pop %v1039
    %v1041 = vmul.f32 %v1013, 1.442695
    %v1042 = vpow.pop %v1041
    %v1043 = vmul.f32 %v1014, 1.442695
    %v1044 = vpow.pop %v1043
    %v1045 = vmul.f32 %v1015, 1.442695
    %v1046 = vpow.pop %v1045
    %v1047 = vmul.f32 %v1016, 1.442695
    %v1048 = vpow.pop %v1047
    %1049 = vadd.xlane.f32.xlu0 %v1018
    %v1050 = vpop.xlane.xlu0 %1049
    %1051 = vadd.xlane.f32.xlu0 %v1020
    %v1052 = vpop.xlane.xlu0 %1051
    %1053 = vadd.xlane.f32.xlu0 %v1022
    %v1054 = vpop.xlane.xlu0 %1053
    %1055 = vadd.xlane.f32.xlu0 %v1024
    %v1056 = vpop.xlane.xlu0 %1055
    %1057 = vadd.xlane.f32.xlu0 %v1026
    %v1058 = vpop.xlane.xlu0 %1057
    %1059 = vadd.xlane.f32.xlu0 %v1028
    %v1060 = vpop.xlane.xlu0 %1059
    %1061 = vadd.xlane.f32.xlu0 %v1030
    %v1062 = vpop.xlane.xlu0 %1061
    %1063 = vadd.xlane.f32.xlu0 %v1032
    %v1064 = vpop.xlane.xlu0 %1063
    %1065 = vadd.xlane.f32.xlu0 %v1034
    %v1066 = vpop.xlane.xlu0 %1065
    %1067 = vadd.xlane.f32.xlu0 %v1036
    %v1068 = vpop.xlane.xlu0 %1067
    %1069 = vadd.xlane.f32.xlu0 %v1038
    %v1070 = vpop.xlane.xlu0 %1069
    %1071 = vadd.xlane.f32.xlu0 %v1040
    %v1072 = vpop.xlane.xlu0 %1071
    %1073 = vadd.xlane.f32.xlu0 %v1042
    %v1074 = vpop.xlane.xlu0 %1073
    %1075 = vadd.xlane.f32.xlu0 %v1044
    %v1076 = vpop.xlane.xlu0 %1075
    %1077 = vadd.xlane.f32.xlu0 %v1046
    %v1078 = vpop.xlane.xlu0 %1077
    %1079 = vadd.xlane.f32.xlu0 %v1048
    %v1080 = vpop.xlane.xlu0 %1079
    %v1081 = vsub.f32 %v1001, %v128
    %v1082 = vsub.f32 %v1002, %v129
    %v1083 = vsub.f32 %v1003, %v130
    %v1084 = vsub.f32 %v1004, %v131
    %v1085 = vsub.f32 %v1005, %v132
    %v1086 = vsub.f32 %v1006, %v133
    %v1087 = vsub.f32 %v1007, %v134
    %v1088 = vsub.f32 %v1008, %v135
    %v1089 = vsub.f32 %v1009, %v136
    %v1090 = vsub.f32 %v1010, %v137
    %v1091 = vsub.f32 %v1011, %v138
    %v1092 = vsub.f32 %v1012, %v139
    %v1093 = vsub.f32 %v1013, %v140
    %v1094 = vsub.f32 %v1014, %v141
    %v1095 = vsub.f32 %v1015, %v142
    %v1096 = vsub.f32 %v1016, %v143
    %v1097 = vmul.f32 %v1018, %v1081
    %v1098 = vmul.f32 %v1020, %v1082
    %v1099 = vmul.f32 %v1022, %v1083
    %v1100 = vmul.f32 %v1024, %v1084
    %v1101 = vmul.f32 %v1026, %v1085
    %v1102 = vmul.f32 %v1028, %v1086
    %v1103 = vmul.f32 %v1030, %v1087
    %v1104 = vmul.f32 %v1032, %v1088
    %v1105 = vmul.f32 %v1034, %v1089
    %v1106 = vmul.f32 %v1036, %v1090
    %v1107 = vmul.f32 %v1038, %v1091
    %v1108 = vmul.f32 %v1040, %v1092
    %v1109 = vmul.f32 %v1042, %v1093
    %v1110 = vmul.f32 %v1044, %v1094
    %v1111 = vmul.f32 %v1046, %v1095
    %v1112 = vmul.f32 %v1048, %v1096
    %1113 = vadd.xlane.f32.xlu0 %v1097
    %v1114 = vpop.xlane.xlu0 %1113
    %1115 = vadd.xlane.f32.xlu0 %v1098
    %v1116 = vpop.xlane.xlu0 %1115
    %1117 = vadd.xlane.f32.xlu0 %v1099
    %v1118 = vpop.xlane.xlu0 %1117
    %1119 = vadd.xlane.f32.xlu0 %v1100
    %v1120 = vpop.xlane.xlu0 %1119
    %1121 = vadd.xlane.f32.xlu0 %v1101
    %v1122 = vpop.xlane.xlu0 %1121
    %1123 = vadd.xlane.f32.xlu0 %v1102
    %v1124 = vpop.xlane.xlu0 %1123
    %1125 = vadd.xlane.f32.xlu0 %v1103
    %v1126 = vpop.xlane.xlu0 %1125
    %1127 = vadd.xlane.f32.xlu0 %v1104
    %v1128 = vpop.xlane.xlu0 %1127
    %1129 = vadd.xlane.f32.xlu0 %v1105
    %v1130 = vpop.xlane.xlu0 %1129
    %1131 = vadd.xlane.f32.xlu0 %v1106
    %v1132 = vpop.xlane.xlu0 %1131
    %1133 = vadd.xlane.f32.xlu0 %v1107
    %v1134 = vpop.xlane.xlu0 %1133
    %1135 = vadd.xlane.f32.xlu0 %v1108
    %v1136 = vpop.xlane.xlu0 %1135
    %1137 = vadd.xlane.f32.xlu0 %v1109
    %v1138 = vpop.xlane.xlu0 %1137
    %1139 = vadd.xlane.f32.xlu0 %v1110
    %v1140 = vpop.xlane.xlu0 %1139
    %1141 = vadd.xlane.f32.xlu0 %v1111
    %v1142 = vpop.xlane.xlu0 %1141
    %1143 = vadd.xlane.f32.xlu0 %v1112
    %v1144 = vpop.xlane.xlu0 %1143
    %v1145 = vrcp.pop %v1050
    %v1146 = vrcp.pop %v1052
    %v1147 = vrcp.pop %v1054
    %v1148 = vrcp.pop %v1056
    %v1149 = vrcp.pop %v1058
    %v1150 = vrcp.pop %v1060
    %v1151 = vrcp.pop %v1062
    %v1152 = vrcp.pop %v1064
    %v1153 = vrcp.pop %v1066
    %v1154 = vrcp.pop %v1068
    %v1155 = vrcp.pop %v1070
    %v1156 = vrcp.pop %v1072
    %v1157 = vrcp.pop %v1074
    %v1158 = vrcp.pop %v1076
    %v1159 = vrcp.pop %v1078
    %v1160 = vrcp.pop %v1080
    %v1161 = vmul.f32 %v1114, %v1145
    %v1162 = vmul.f32 %v1116, %v1146
    %v1163 = vmul.f32 %v1118, %v1147
    %v1164 = vmul.f32 %v1120, %v1148
    %v1165 = vmul.f32 %v1122, %v1149
    %v1166 = vmul.f32 %v1124, %v1150
    %v1167 = vmul.f32 %v1126, %v1151
    %v1168 = vmul.f32 %v1128, %v1152
    %v1169 = vmul.f32 %v1130, %v1153
    %v1170 = vmul.f32 %v1132, %v1154
    %v1171 = vmul.f32 %v1134, %v1155
    %v1172 = vmul.f32 %v1136, %v1156
    %v1173 = vmul.f32 %v1138, %v1157
    %v1174 = vmul.f32 %v1140, %v1158
    %v1175 = vmul.f32 %v1142, %v1159
    %v1176 = vmul.f32 %v1144, %v1160
    %v1177 = vlog2.pop %v1050
    %v1178 = vmul.f32 %v1177, 0.6931472
    %v1179 = vlog2.pop %v1052
    %v1180 = vmul.f32 %v1179, 0.6931472
    %v1181 = vlog2.pop %v1054
    %v1182 = vmul.f32 %v1181, 0.6931472
    %v1183 = vlog2.pop %v1056
    %v1184 = vmul.f32 %v1183, 0.6931472
    %v1185 = vlog2.pop %v1058
    %v1186 = vmul.f32 %v1185, 0.6931472
    %v1187 = vlog2.pop %v1060
    %v1188 = vmul.f32 %v1187, 0.6931472
    %v1189 = vlog2.pop %v1062
    %v1190 = vmul.f32 %v1189, 0.6931472
    %v1191 = vlog2.pop %v1064
    %v1192 = vmul.f32 %v1191, 0.6931472
    %v1193 = vlog2.pop %v1066
    %v1194 = vmul.f32 %v1193, 0.6931472
    %v1195 = vlog2.pop %v1068
    %v1196 = vmul.f32 %v1195, 0.6931472
    %v1197 = vlog2.pop %v1070
    %v1198 = vmul.f32 %v1197, 0.6931472
    %v1199 = vlog2.pop %v1072
    %v1200 = vmul.f32 %v1199, 0.6931472
    %v1201 = vlog2.pop %v1074
    %v1202 = vmul.f32 %v1201, 0.6931472
    %v1203 = vlog2.pop %v1076
    %v1204 = vmul.f32 %v1203, 0.6931472
    %v1205 = vlog2.pop %v1078
    %v1206 = vmul.f32 %v1205, 0.6931472
    %v1207 = vlog2.pop %v1080
    %v1208 = vmul.f32 %v1207, 0.6931472
    %v1209 = vsub.f32 %v1161, %v1178
    %v1210 = vsub.f32 %v1162, %v1180
    %v1211 = vsub.f32 %v1163, %v1182
    %v1212 = vsub.f32 %v1164, %v1184
    %v1213 = vsub.f32 %v1165, %v1186
    %v1214 = vsub.f32 %v1166, %v1188
    %v1215 = vsub.f32 %v1167, %v1190
    %v1216 = vsub.f32 %v1168, %v1192
    %v1217 = vsub.f32 %v1169, %v1194
    %v1218 = vsub.f32 %v1170, %v1196
    %v1219 = vsub.f32 %v1171, %v1198
    %v1220 = vsub.f32 %v1172, %v1200
    %v1221 = vsub.f32 %v1173, %v1202
    %v1222 = vsub.f32 %v1174, %v1204
    %v1223 = vsub.f32 %v1175, %v1206
    %v1224 = vsub.f32 %v1176, %v1208
    %v1225 = vadd.f32 %v736, %v1209
    %v1226 = vadd.f32 %v737, %v1210
    %v1227 = vadd.f32 %v738, %v1211
    %v1228 = vadd.f32 %v739, %v1212
    %v1229 = vadd.f32 %v740, %v1213
    %v1230 = vadd.f32 %v741, %v1214
    %v1231 = vadd.f32 %v742, %v1215
    %v1232 = vadd.f32 %v743, %v1216
    %v1233 = vadd.f32 %v744, %v1217
    %v1234 = vadd.f32 %v745, %v1218
    %v1235 = vadd.f32 %v746, %v1219
    %v1236 = vadd.f32 %v747, %v1220
    %v1237 = vadd.f32 %v748, %v1221
    %v1238 = vadd.f32 %v749, %v1222
    %v1239 = vadd.f32 %v750, %v1223
    %v1240 = vadd.f32 %v751, %v1224
    %vm1241 = vcmask 7168
    %1242 = vst.msk [vmem:[%s10] sm:$0xff] %vm1241, %v1225
    %1243 = vst.msk [vmem:[%s10 + $0x8] sm:$0xff] %vm1241, %v1226
    %1244 = vst.msk [vmem:[%s10 + $0x10] sm:$0xff] %vm1241, %v1227
    %1245 = vst.msk [vmem:[%s10 + $0x18] sm:$0xff] %vm1241, %v1228
    %1246 = vst.msk [vmem:[%s10 + $0x20] sm:$0xff] %vm1241, %v1229
    %1247 = vst.msk [vmem:[%s10 + $0x28] sm:$0xff] %vm1241, %v1230
    %1248 = vst.msk [vmem:[%s10 + $0x30] sm:$0xff] %vm1241, %v1231
    %1249 = vst.msk [vmem:[%s10 + $0x38] sm:$0xff] %vm1241, %v1232
    %1250 = vst.msk [vmem:[%s10 + $0x40] sm:$0xff] %vm1241, %v1233
    %1251 = vst.msk [vmem:[%s10 + $0x48] sm:$0xff] %vm1241, %v1234
    %1252 = vst.msk [vmem:[%s10 + $0x50] sm:$0xff] %vm1241, %v1235
    %1253 = vst.msk [vmem:[%s10 + $0x58] sm:$0xff] %vm1241, %v1236
    %1254 = vst.msk [vmem:[%s10 + $0x60] sm:$0xff] %vm1241, %v1237
    %1255 = vst.msk [vmem:[%s10 + $0x68] sm:$0xff] %vm1241, %v1238
    %1256 = vst.msk [vmem:[%s10 + $0x70] sm:$0xff] %vm1241, %v1239
    %1257 = vst.msk [vmem:[%s10 + $0x78] sm:$0xff] %vm1241, %v1240
    // Predicated region
    $region38: #{tpu_custom_call.1} parent=1 // pred_check
      _
    $region39: #{tpu_custom_call.1} parent=1 // pred_check_branch
      %1259 = sbr.rel (0) target = $region41
    $region40: #{tpu_custom_call.1} parent=1 // pred_region
      %s1261 = ssub.s32 2048, 2048
      %1262 = vsyncadd [#allocation3], %s1261
      %s1263 = sshll.u32 [#allocation2], 4
      %s1264 = int_to_ptr.vmem [resolvable:$true] %s1263
      %1269 = dma.vmem_to_hbm [thread:$0]  %s1264, 2048, %s9, [#allocation3], 128, 128, 8
    $region41: #{tpu_custom_call.1} parent=1 // pred_fallthru
      _
    // Predicated region
    $region42: #{tpu_custom_call.1} parent=1 // pred_check
      _
    $region43: #{tpu_custom_call.1} parent=1 // pred_check_branch
      %1271 = sbr.rel (0) target = $region45
    $region44: #{tpu_custom_call.1} parent=1 // pred_region
      _
    $region45: #{tpu_custom_call.1} parent=1 // pred_fallthru
      _
    // Predicated region
    $region46: #{tpu_custom_call.1} parent=1 // pred_check
      _
    $region47: #{tpu_custom_call.1} parent=1 // pred_check_branch
      %1273 = sbr.rel (0) target = $region49
    $region48: #{tpu_custom_call.1} parent=1 // pred_region
      %1274 = dma.done [#allocation3], 2048
    $region49: #{tpu_custom_call.1} parent=1 // pred_fallthru
      _
    // Predicated region
    $region50: #{tpu_custom_call.1} parent=1 // pred_check
      _
    $region51: #{tpu_custom_call.1} parent=1 // pred_check_branch
      %1276 = sbr.rel (0) target = $region53
    $region52: #{tpu_custom_call.1} parent=1 // pred_region
      _
    $region53: #{tpu_custom_call.1} parent=1 // pred_fallthru
      _
    %1277 = vsyncpa [#allocation3], 1

</llo_original>
